<compile_context>
chip_gen: v5e
topology: v5e:2x2
jax: 0.10.0
libtpu: 0.0.40
codegen_flags: <defaults>
</compile_context>

<pallas_src>
import jax
import jax.numpy as jnp
from jax.experimental import pallas as pl
from jax.experimental.pallas import tpu as pltpu

_EPS = 1e-5


# ----------------------------------------------------------------------------
# Fused Pallas kernel
# ----------------------------------------------------------------------------
def _decoder_kernel(x_ref, w3_ref, g3_ref, b3_ref, w4_ref, g4_ref, b4_ref,
                    w5_ref, b5_ref, o_ref, h1_ref, h2_ref):
    """Fully fused decoder forward.

    Layout conventions (un-scrambled once by the wrapper at the very end):
      * layer-3 output: 4 sub-pixel groups stacked group-major along ROWS of
        h1_ref   (row = g1*M0 + r0,            g1 = a1*2 + b1).
      * layer-4/5 outputs: 4 sub-pixel groups packed along LANES
        (h2 col = g2*64 + k ; out col = g2*32 + g3*8 + c, channels padded 3->8).
    """
    m0 = x_ref.shape[0]              # input pixels  (N*H*W)
    c3 = g3_ref.shape[1]             # 128
    c4 = w4_ref.shape[1] // 4        # 64
    m1 = 4 * m0                      # rows after layer 3

    # ---- deconv3 (no bias) + ReLU : one wide bf16 MXU matmul -------------
    y3 = jnp.dot(x_ref[...].astype(jnp.bfloat16), w3_ref[...],
                 preferred_element_type=jnp.float32)           # (m0, 4*c3)
    y3 = jnp.maximum(y3, 0.0)
    # Scatter the 4 lane groups (128-aligned -> tile-aligned copies) into
    # group-major rows of the h1 scratch.
    for g in range(4):
        h1_ref[g * m0:(g + 1) * m0, :] = y3[:, g * c3:(g + 1) * c3]

    # ---- BatchNorm2d(128), training mode (biased variance), f32 ----------
    inv_m1 = 1.0 / m1
    mean1 = jnp.sum(h1_ref[...], axis=0, keepdims=True) * inv_m1
    cen1 = h1_ref[...] - mean1
    var1 = jnp.sum(cen1 * cen1, axis=0, keepdims=True) * inv_m1
    scale1 = g3_ref[...] * jax.lax.rsqrt(var1 + _EPS)
    shift1 = b3_ref[...] - mean1 * scale1
    h1_ref[...] = h1_ref[...] * scale1 + shift1                # in place

    # ---- deconv4 (no bias) + ReLU : groups packed on lanes ----------------
    y4 = jnp.dot(h1_ref[...].astype(jnp.bfloat16), w4_ref[...],
                 preferred_element_type=jnp.float32)           # (m1, 4*c4)
    h2_ref[...] = jnp.maximum(y4, 0.0)

    # ---- BatchNorm2d(64), training mode, groups-on-lanes ------------------
    # Per-channel stats must also reduce over the 4 lane groups (they are all
    # batch samples of the same channel).  A cyclic sum of the (1, 4*c4)
    # column sums over shifts {c4, 2c4, 3c4} places the per-channel total on
    # every lane (XLU rolls, no sub-128 lane slicing).
    inv_n2 = 1.0 / (4.0 * m1)

    def lane_group_sum(v):
        return (v + pltpu.roll(v, c4, axis=1)
                + pltpu.roll(v, 2 * c4, axis=1)
                + pltpu.roll(v, 3 * c4, axis=1))

    mean2 = lane_group_sum(jnp.sum(h2_ref[...], axis=0, keepdims=True)) * inv_n2
    cen2 = h2_ref[...] - mean2
    var2 = lane_group_sum(jnp.sum(cen2 * cen2, axis=0, keepdims=True)) * inv_n2
    scale2 = g4_ref[...] * jax.lax.rsqrt(var2 + _EPS)   # g4/b4 pre-tiled (1, 4*c4)
    shift2 = b4_ref[...] - mean2 * scale2
    h2_ref[...] = h2_ref[...] * scale2 + shift2                 # in place

    # ---- deconv5 (+bias) + tanh -------------------------------------------
    # Block-diagonal weight keeps the 4 lane groups independent and emits the
    # whole result as a single lane-dense (m1, 128) tile.
    y5 = jnp.dot(h2_ref[...].astype(jnp.bfloat16), w5_ref[...],
                 preferred_element_type=jnp.float32) + b5_ref[...]
    o_ref[...] = jnp.tanh(y5)


def _fused_decoder_call(x_flat, w3p, g3, b3, w4p, g4t, b4t, w5bd, b5bd):
    m0 = x_flat.shape[0]
    m1 = 4 * m0
    c_out = w5bd.shape[1]            # 128 = 4 groups * (4 sub-pixels * 8 ch)

    def full(arr):
        nd = arr.ndim
        return pl.BlockSpec(arr.shape, lambda i, nd=nd: (0,) * nd)

    return pl.pallas_call(
        _decoder_kernel,
        out_shape=jax.ShapeDtypeStruct((m1, c_out), jnp.float32),
        grid=(1,),
        in_specs=[full(a) for a in
                  (x_flat, w3p, g3, b3, w4p, g4t, b4t, w5bd, b5bd)],
        out_specs=pl.BlockSpec((m1, c_out), lambda i: (0, 0)),
        scratch_shapes=[
            pltpu.VMEM((m1, w3p.shape[1] // 4), jnp.float32),   # h1 (4*M0, 128)
            pltpu.VMEM((m1, w4p.shape[1]), jnp.float32),        # h2 (4*M0, 256)
        ],
        compiler_params=pltpu.CompilerParams(
            dimension_semantics=("arbitrary",)),
    )(x_flat, w3p, g3, b3, w4p, g4t, b4t, w5bd, b5bd)


# ----------------------------------------------------------------------------
# Wrapper: parameter packing + input flatten + final pixel un-shuffle
# ----------------------------------------------------------------------------
def decoder_forward(x_nchw, params):
    """Matches PyTorch Decoder.forward (module in default training mode)."""
    n, cin, h, w = x_nchw.shape
    c3 = params["g3"].shape[0]                 # 128
    c4 = params["g4"].shape[0]                 # 64
    c5 = params["w5"].shape[1]                 # 3
    c5p = 8                                    # pad channels to one sublane group
    wdt = jnp.bfloat16

    # Layers 3/4: pack the 4 sub-pixel groups along output lanes,
    #   col = (a*2 + b) * Cout + o.
    w3p = jnp.transpose(params["w3"], (0, 2, 3, 1)).reshape(cin, 4 * c3).astype(wdt)
    w4p = jnp.transpose(params["w4"], (0, 2, 3, 1)).reshape(c3, 4 * c4).astype(wdt)

    # Layer 5: per-group block (k, g3*8 + c) with channels zero-padded 3->8,
    # made block-diagonal over the 4 layer-4 lane groups so the final matmul
    # emits one lane-dense (4*M0, 128) tile.
    w5blk = jnp.transpose(params["w5"], (0, 2, 3, 1))            # (c4, 2, 2, c5)
    w5blk = jnp.pad(w5blk, ((0, 0), (0, 0), (0, 0), (0, c5p - c5)))
    w5blk = w5blk.reshape(c4, 4 * c5p)                           # (64, 32)
    w5bd = jnp.kron(jnp.eye(4, dtype=jnp.float32), w5blk).astype(wdt)  # (256, 128)
    b5bd = jnp.tile(jnp.pad(params["bias5"], (0, c5p - c5)), 16).reshape(1, 16 * c5p)

    g3 = params["g3"].reshape(1, c3)
    b3 = params["b3"].reshape(1, c3)
    g4t = jnp.tile(params["g4"], 4).reshape(1, 4 * c4)   # pre-tiled for the
    b4t = jnp.tile(params["b4"], 4).reshape(1, 4 * c4)   # groups-on-lanes BN

    # Input NCHW -> channels-last rows (N*H*W, Cin).
    x_flat = jnp.transpose(x_nchw, (0, 2, 3, 1)).reshape(n * h * w, cin)

    out = _fused_decoder_call(x_flat, w3p, g3, b3, w4p, g4t, b4t, w5bd, b5bd)

    # out[(a1*2+b1)*NHW + n'*HW + h'*W + w', (a2*2+b2)*32 + (a3*2+b3)*8 + c]
    #   = decoder(x)[n', c, 8h'+4a1+2a2+a3, 8w'+4b1+2b2+b3]
    out = out.reshape(2, 2, n, h, w, 2, 2, 2, 2, c5p)     # a1 b1 n h w a2 b2 a3 b3 c
    out = jnp.transpose(out, (2, 9, 3, 0, 5, 7, 4, 1, 6, 8))  # n c h a1 a2 a3 w b1 b2 b3
    out = out.reshape(n, c5p, 8 * h, 8 * w)
    return out[:, :c5]


# ----------------------------------------------------------------------------
# Pure-JAX reference (NCHW) for correctness check
# ----------------------------------------------------------------------------
def _deconv2x2_ref(x, wgt, cast_bf16):
    if cast_bf16:   # mirror the kernel's bf16 dot inputs (f32 accumulation)
        x = x.astype(jnp.bfloat16)
        wgt = wgt.astype(jnp.bfloat16)
    y = jnp.einsum("nihw,ioab->nohawb", x, wgt,
                   preferred_element_type=jnp.float32)
    n, co, hh, _, ww, _ = y.shape
    return y.reshape(n, co, 2 * hh, 2 * ww)


def _bn_ref(x, gamma, beta, eps=_EPS):
    mean = x.mean(axis=(0, 2, 3), keepdims=True)
    var = x.var(axis=(0, 2, 3), keepdims=True)       # biased, as in PyTorch train
    xh = (x - mean) / jnp.sqrt(var + eps)
    return xh * gamma.reshape(1, -1, 1, 1) + beta.reshape(1, -1, 1, 1)


def decoder_ref(x, p, cast_bf16=False):
    x = jax.nn.relu(_deconv2x2_ref(x, p["w3"], cast_bf16))
    x = _bn_ref(x, p["g3"], p["b3"])
    x = jax.nn.relu(_deconv2x2_ref(x, p["w4"], cast_bf16))
    x = _bn_ref(x, p["g4"], p["b4"])
    x = _deconv2x2_ref(x, p["w5"], cast_bf16) + p["bias5"].reshape(1, -1, 1, 1)
    return jnp.tanh(x)


# ----------------------------------------------------------------------------
def init_params(key):
    k = jax.random.split(key, 4)
    return {
        "w3": jax.random.normal(k[0], (256, 128, 2, 2), jnp.float32) * 0.05,
        "g3": jnp.ones((128,), jnp.float32),
        "b3": jnp.zeros((128,), jnp.float32),
        "w4": jax.random.normal(k[1], (128, 64, 2, 2), jnp.float32) * 0.05,
        "g4": jnp.ones((64,), jnp.float32),
        "b4": jnp.zeros((64,), jnp.float32),
        "w5": jax.random.normal(k[2], (64, 3, 2, 2), jnp.float32) * 0.05,
        "bias5": jax.random.normal(k[3], (3,), jnp.float32) * 0.05,
    }


if __name__ == "__main__":
    key = jax.random.PRNGKey(0)
    kx, kp = jax.random.split(key)
    # in_channels fixed at 256 by the module's __init__; small batch/spatial.
    x = jax.random.normal(kx, (2, 256, 4, 4), jnp.float32)
    params = init_params(kp)

    out = jax.block_until_ready(jax.jit(decoder_forward)(x, params))
    assert out.shape == (2, 3, 32, 32), out.shape

    # Tight check vs. a reference using the same bf16-rounded dot inputs
    # (isolates kernel layout / fusion / BN correctness from the intentional
    # bf16 weight quantization).
    ref_q = jax.block_until_ready(decoder_ref(x, params, cast_bf16=True))
    assert jnp.allclose(out, ref_q, atol=1e-3, rtol=1e-3), \
        float(jnp.max(jnp.abs(out - ref_q)))

    # Loose sanity check vs. the full-f32 PyTorch-equivalent reference
    # (bounds the bf16 quantization error).
    ref_f = jax.block_until_ready(decoder_ref(x, params, cast_bf16=False))
    assert jnp.allclose(out, ref_f, atol=5e-2, rtol=5e-2), \
        float(jnp.max(jnp.abs(out - ref_f)))

    print("KERNEL_OK")
</pallas_src>

<mosaic_0001>
module attributes {stable_mosaic.version = 11 : i64} {
  func.func @_decoder_kernel(%arg0: i32, %arg1: memref<32x256xf32, #tpu.memory_space<vmem>>, %arg2: memref<256x512xbf16, #tpu.memory_space<vmem>>, %arg3: memref<1x128xf32, #tpu.memory_space<vmem>>, %arg4: memref<1x128xf32, #tpu.memory_space<vmem>>, %arg5: memref<128x256xbf16, #tpu.memory_space<vmem>>, %arg6: memref<1x256xf32, #tpu.memory_space<vmem>>, %arg7: memref<1x256xf32, #tpu.memory_space<vmem>>, %arg8: memref<256x128xbf16, #tpu.memory_space<vmem>>, %arg9: memref<1x128xf32, #tpu.memory_space<vmem>>, %arg10: memref<128x128xf32, #tpu.memory_space<vmem>>, %arg11: memref<128x128xf32, #tpu.memory_space<vmem>>, %arg12: memref<128x256xf32, #tpu.memory_space<vmem>>) attributes {dimension_semantics = [#tpu.dimension_semantics<arbitrary>], iteration_bounds = array<i64: 1>, scalar_prefetch = 0 : i64, scratch_operands = 2 : i64, tpu.core_type = #tpu.core_type<tc>, window_params = [{pipeline_mode = #tpu.pipeline_mode<synchronous>, transform_indices = @transform_0, window_bounds = array<i64: 32, 256>}, {pipeline_mode = #tpu.pipeline_mode<synchronous>, transform_indices = @transform_1, window_bounds = array<i64: 256, 512>}, {pipeline_mode = #tpu.pipeline_mode<synchronous>, transform_indices = @transform_2, window_bounds = array<i64: 1, 128>}, {pipeline_mode = #tpu.pipeline_mode<synchronous>, transform_indices = @transform_3, window_bounds = array<i64: 1, 128>}, {pipeline_mode = #tpu.pipeline_mode<synchronous>, transform_indices = @transform_4, window_bounds = array<i64: 128, 256>}, {pipeline_mode = #tpu.pipeline_mode<synchronous>, transform_indices = @transform_5, window_bounds = array<i64: 1, 256>}, {pipeline_mode = #tpu.pipeline_mode<synchronous>, transform_indices = @transform_6, window_bounds = array<i64: 1, 256>}, {pipeline_mode = #tpu.pipeline_mode<synchronous>, transform_indices = @transform_7, window_bounds = array<i64: 256, 128>}, {pipeline_mode = #tpu.pipeline_mode<synchronous>, transform_indices = @transform_8, window_bounds = array<i64: 1, 128>}, {pipeline_mode = #tpu.pipeline_mode<synchronous>, transform_indices = @transform_9, window_bounds = array<i64: 128, 128>}]} {
    %c0 = arith.constant 0 : index
    %c0_0 = arith.constant 0 : index
    %0 = vector.load %arg1[%c0, %c0_0] : memref<32x256xf32, #tpu.memory_space<vmem>>, vector<32x256xf32>
    %1 = arith.truncf %0 : vector<32x256xf32> to vector<32x256xbf16>
    %c0_1 = arith.constant 0 : index
    %c0_2 = arith.constant 0 : index
    %2 = vector.load %arg2[%c0_1, %c0_2] : memref<256x512xbf16, #tpu.memory_space<vmem>>, vector<256x512xbf16>
    %cst = arith.constant dense<0.000000e+00> : vector<32x512xf32>
    %3 = tpu.matmul %1, %2, %cst {dimension_numbers = #tpu.dot_dimension_numbers<[1], [0], [0], [1], [0, 0, 1, 1], [], []>} : vector<32x256xbf16>, vector<256x512xbf16>, vector<32x512xf32> -> vector<32x512xf32>
    %cst_3 = arith.constant 0.000000e+00 : f32
    %4 = vector.broadcast %cst_3 : f32 to vector<32x512xf32>
    %5 = arith.maximumf %3, %4 : vector<32x512xf32>
    %6 = vector.extract_strided_slice %5 {offsets = [0, 0], sizes = [32, 128], strides = [1, 1]} : vector<32x512xf32> to vector<32x128xf32>
    %c0_4 = arith.constant 0 : index
    %c0_5 = arith.constant 0 : index
    %7 = vector.load %arg11[%c0_4, %c0_5] : memref<128x128xf32, #tpu.memory_space<vmem>>, vector<32x128xf32>
    tpu.vector_store %arg11[%c0_4, %c0_5], %6 {strides = array<i32>} : memref<128x128xf32, #tpu.memory_space<vmem>>, vector<32x128xf32>,
    %8 = vector.extract_strided_slice %5 {offsets = [0, 128], sizes = [32, 128], strides = [1, 1]} : vector<32x512xf32> to vector<32x128xf32>
    %c32 = arith.constant 32 : index
    %c0_6 = arith.constant 0 : index
    %9 = vector.load %arg11[%c32, %c0_6] : memref<128x128xf32, #tpu.memory_space<vmem>>, vector<32x128xf32>
    tpu.vector_store %arg11[%c32, %c0_6], %8 {strides = array<i32>} : memref<128x128xf32, #tpu.memory_space<vmem>>, vector<32x128xf32>,
    %10 = vector.extract_strided_slice %5 {offsets = [0, 256], sizes = [32, 128], strides = [1, 1]} : vector<32x512xf32> to vector<32x128xf32>
    %c64 = arith.constant 64 : index
    %c0_7 = arith.constant 0 : index
    %11 = vector.load %arg11[%c64, %c0_7] : memref<128x128xf32, #tpu.memory_space<vmem>>, vector<32x128xf32>
    tpu.vector_store %arg11[%c64, %c0_7], %10 {strides = array<i32>} : memref<128x128xf32, #tpu.memory_space<vmem>>, vector<32x128xf32>,
    %12 = vector.extract_strided_slice %5 {offsets = [0, 384], sizes = [32, 128], strides = [1, 1]} : vector<32x512xf32> to vector<32x128xf32>
    %c96 = arith.constant 96 : index
    %c0_8 = arith.constant 0 : index
    %13 = vector.load %arg11[%c96, %c0_8] : memref<128x128xf32, #tpu.memory_space<vmem>>, vector<32x128xf32>
    tpu.vector_store %arg11[%c96, %c0_8], %12 {strides = array<i32>} : memref<128x128xf32, #tpu.memory_space<vmem>>, vector<32x128xf32>,
    %c0_9 = arith.constant 0 : index
    %c0_10 = arith.constant 0 : index
    %14 = vector.load %arg11[%c0_9, %c0_10] : memref<128x128xf32, #tpu.memory_space<vmem>>, vector<128x128xf32>
    %cst_11 = arith.constant dense<0.000000e+00> : vector<128xf32>
    %15 = vector.multi_reduction <add>, %14, %cst_11 [0] : vector<128x128xf32> to vector<128xf32>
    %16 = vector.shape_cast %15 : vector<128xf32> to vector<1x128xf32>
    %cst_12 = arith.constant 7.812500e-03 : f32
    %17 = vector.broadcast %cst_12 : f32 to vector<1x128xf32>
    %18 = arith.mulf %16, %17 : vector<1x128xf32>
    %c0_13 = arith.constant 0 : index
    %c0_14 = arith.constant 0 : index
    %19 = vector.load %arg11[%c0_13, %c0_14] : memref<128x128xf32, #tpu.memory_space<vmem>>, vector<128x128xf32>
    %20 = vector.broadcast %18 : vector<1x128xf32> to vector<128x128xf32>
    %21 = arith.subf %19, %20 : vector<128x128xf32>
    %22 = arith.mulf %21, %21 : vector<128x128xf32>
    %cst_15 = arith.constant dense<0.000000e+00> : vector<128xf32>
    %23 = vector.multi_reduction <add>, %22, %cst_15 [0] : vector<128x128xf32> to vector<128xf32>
    %24 = vector.shape_cast %23 : vector<128xf32> to vector<1x128xf32>
    %cst_16 = arith.constant 7.812500e-03 : f32
    %25 = vector.broadcast %cst_16 : f32 to vector<1x128xf32>
    %26 = arith.mulf %24, %25 : vector<1x128xf32>
    %c0_17 = arith.constant 0 : index
    %c0_18 = arith.constant 0 : index
    %27 = vector.load %arg3[%c0_17, %c0_18] : memref<1x128xf32, #tpu.memory_space<vmem>>, vector<1x128xf32>
    %cst_19 = arith.constant 9.99999974E-6 : f32
    %28 = vector.broadcast %cst_19 : f32 to vector<1x128xf32>
    %29 = arith.addf %26, %28 : vector<1x128xf32>
    %30 = math.rsqrt %29 : vector<1x128xf32>
    %31 = arith.mulf %27, %30 : vector<1x128xf32>
    %c0_20 = arith.constant 0 : index
    %c0_21 = arith.constant 0 : index
    %32 = vector.load %arg4[%c0_20, %c0_21] : memref<1x128xf32, #tpu.memory_space<vmem>>, vector<1x128xf32>
    %33 = arith.mulf %18, %31 : vector<1x128xf32>
    %34 = arith.subf %32, %33 : vector<1x128xf32>
    %c0_22 = arith.constant 0 : index
    %c0_23 = arith.constant 0 : index
    %35 = vector.load %arg11[%c0_22, %c0_23] : memref<128x128xf32, #tpu.memory_space<vmem>>, vector<128x128xf32>
    %36 = vector.broadcast %31 : vector<1x128xf32> to vector<128x128xf32>
    %37 = arith.mulf %35, %36 : vector<128x128xf32>
    %38 = vector.broadcast %34 : vector<1x128xf32> to vector<128x128xf32>
    %39 = arith.addf %37, %38 : vector<128x128xf32>
    %c0_24 = arith.constant 0 : index
    %c0_25 = arith.constant 0 : index
    %40 = vector.load %arg11[%c0_24, %c0_25] : memref<128x128xf32, #tpu.memory_space<vmem>>, vector<128x128xf32>
    tpu.vector_store %arg11[%c0_24, %c0_25], %39 {strides = array<i32>} : memref<128x128xf32, #tpu.memory_space<vmem>>, vector<128x128xf32>,
    %c0_26 = arith.constant 0 : index
    %c0_27 = arith.constant 0 : index
    %41 = vector.load %arg11[%c0_26, %c0_27] : memref<128x128xf32, #tpu.memory_space<vmem>>, vector<128x128xf32>
    %42 = arith.truncf %41 : vector<128x128xf32> to vector<128x128xbf16>
    %c0_28 = arith.constant 0 : index
    %c0_29 = arith.constant 0 : index
    %43 = vector.load %arg5[%c0_28, %c0_29] : memref<128x256xbf16, #tpu.memory_space<vmem>>, vector<128x256xbf16>
    %cst_30 = arith.constant dense<0.000000e+00> : vector<128x256xf32>
    %44 = tpu.matmul %42, %43, %cst_30 {dimension_numbers = #tpu.dot_dimension_numbers<[1], [0], [0], [1], [0, 0, 1, 1], [], []>} : vector<128x128xbf16>, vector<128x256xbf16>, vector<128x256xf32> -> vector<128x256xf32>
    %cst_31 = arith.constant 0.000000e+00 : f32
    %45 = vector.broadcast %cst_31 : f32 to vector<128x256xf32>
    %46 = arith.maximumf %44, %45 : vector<128x256xf32>
    %c0_32 = arith.constant 0 : index
    %c0_33 = arith.constant 0 : index
    %47 = vector.load %arg12[%c0_32, %c0_33] : memref<128x256xf32, #tpu.memory_space<vmem>>, vector<128x256xf32>
    tpu.vector_store %arg12[%c0_32, %c0_33], %46 {strides = array<i32>} : memref<128x256xf32, #tpu.memory_space<vmem>>, vector<128x256xf32>,
    %c0_34 = arith.constant 0 : index
    %c0_35 = arith.constant 0 : index
    %48 = vector.load %arg12[%c0_34, %c0_35] : memref<128x256xf32, #tpu.memory_space<vmem>>, vector<128x256xf32>
    %cst_36 = arith.constant dense<0.000000e+00> : vector<256xf32>
    %49 = vector.multi_reduction <add>, %48, %cst_36 [0] : vector<128x256xf32> to vector<256xf32>
    %50 = vector.shape_cast %49 : vector<256xf32> to vector<1x256xf32>
    %c64_i32 = arith.constant 64 : i32
    %51 = tpu.dynamic_rotate %50 by %c64_i32 dim 1 : vector<1x256xf32>, i32 -> vector<1x256xf32>
    %52 = arith.addf %50, %51 : vector<1x256xf32>
    %c128_i32 = arith.constant 128 : i32
    %53 = tpu.dynamic_rotate %50 by %c128_i32 dim 1 : vector<1x256xf32>, i32 -> vector<1x256xf32>
    %54 = arith.addf %52, %53 : vector<1x256xf32>
    %c192_i32 = arith.constant 192 : i32
    %55 = tpu.dynamic_rotate %50 by %c192_i32 dim 1 : vector<1x256xf32>, i32 -> vector<1x256xf32>
    %56 = arith.addf %54, %55 : vector<1x256xf32>
    %cst_37 = arith.constant 0.001953125 : f32
    %57 = vector.broadcast %cst_37 : f32 to vector<1x256xf32>
    %58 = arith.mulf %56, %57 : vector<1x256xf32>
    %c0_38 = arith.constant 0 : index
    %c0_39 = arith.constant 0 : index
    %59 = vector.load %arg12[%c0_38, %c0_39] : memref<128x256xf32, #tpu.memory_space<vmem>>, vector<128x256xf32>
    %60 = vector.broadcast %58 : vector<1x256xf32> to vector<128x256xf32>
    %61 = arith.subf %59, %60 : vector<128x256xf32>
    %62 = arith.mulf %61, %61 : vector<128x256xf32>
    %cst_40 = arith.constant dense<0.000000e+00> : vector<256xf32>
    %63 = vector.multi_reduction <add>, %62, %cst_40 [0] : vector<128x256xf32> to vector<256xf32>
    %64 = vector.shape_cast %63 : vector<256xf32> to vector<1x256xf32>
    %c64_i32_41 = arith.constant 64 : i32
    %65 = tpu.dynamic_rotate %64 by %c64_i32_41 dim 1 : vector<1x256xf32>, i32 -> vector<1x256xf32>
    %66 = arith.addf %64, %65 : vector<1x256xf32>
    %c128_i32_42 = arith.constant 128 : i32
    %67 = tpu.dynamic_rotate %64 by %c128_i32_42 dim 1 : vector<1x256xf32>, i32 -> vector<1x256xf32>
    %68 = arith.addf %66, %67 : vector<1x256xf32>
    %c192_i32_43 = arith.constant 192 : i32
    %69 = tpu.dynamic_rotate %64 by %c192_i32_43 dim 1 : vector<1x256xf32>, i32 -> vector<1x256xf32>
    %70 = arith.addf %68, %69 : vector<1x256xf32>
    %cst_44 = arith.constant 0.001953125 : f32
    %71 = vector.broadcast %cst_44 : f32 to vector<1x256xf32>
    %72 = arith.mulf %70, %71 : vector<1x256xf32>
    %c0_45 = arith.constant 0 : index
    %c0_46 = arith.constant 0 : index
    %73 = vector.load %arg6[%c0_45, %c0_46] : memref<1x256xf32, #tpu.memory_space<vmem>>, vector<1x256xf32>
    %cst_47 = arith.constant 9.99999974E-6 : f32
    %74 = vector.broadcast %cst_47 : f32 to vector<1x256xf32>
    %75 = arith.addf %72, %74 : vector<1x256xf32>
    %76 = math.rsqrt %75 : vector<1x256xf32>
    %77 = arith.mulf %73, %76 : vector<1x256xf32>
    %c0_48 = arith.constant 0 : index
    %c0_49 = arith.constant 0 : index
    %78 = vector.load %arg7[%c0_48, %c0_49] : memref<1x256xf32, #tpu.memory_space<vmem>>, vector<1x256xf32>
    %79 = arith.mulf %58, %77 : vector<1x256xf32>
    %80 = arith.subf %78, %79 : vector<1x256xf32>
    %c0_50 = arith.constant 0 : index
    %c0_51 = arith.constant 0 : index
    %81 = vector.load %arg12[%c0_50, %c0_51] : memref<128x256xf32, #tpu.memory_space<vmem>>, vector<128x256xf32>
    %82 = vector.broadcast %77 : vector<1x256xf32> to vector<128x256xf32>
    %83 = arith.mulf %81, %82 : vector<128x256xf32>
    %84 = vector.broadcast %80 : vector<1x256xf32> to vector<128x256xf32>
    %85 = arith.addf %83, %84 : vector<128x256xf32>
    %c0_52 = arith.constant 0 : index
    %c0_53 = arith.constant 0 : index
    %86 = vector.load %arg12[%c0_52, %c0_53] : memref<128x256xf32, #tpu.memory_space<vmem>>, vector<128x256xf32>
    tpu.vector_store %arg12[%c0_52, %c0_53], %85 {strides = array<i32>} : memref<128x256xf32, #tpu.memory_space<vmem>>, vector<128x256xf32>,
    %c0_54 = arith.constant 0 : index
    %c0_55 = arith.constant 0 : index
    %87 = vector.load %arg12[%c0_54, %c0_55] : memref<128x256xf32, #tpu.memory_space<vmem>>, vector<128x256xf32>
    %88 = arith.truncf %87 : vector<128x256xf32> to vector<128x256xbf16>
    %c0_56 = arith.constant 0 : index
    %c0_57 = arith.constant 0 : index
    %89 = vector.load %arg8[%c0_56, %c0_57] : memref<256x128xbf16, #tpu.memory_space<vmem>>, vector<256x128xbf16>
    %cst_58 = arith.constant dense<0.000000e+00> : vector<128x128xf32>
    %90 = tpu.matmul %88, %89, %cst_58 {dimension_numbers = #tpu.dot_dimension_numbers<[1], [0], [0], [1], [0, 0, 1, 1], [], []>} : vector<128x256xbf16>, vector<256x128xbf16>, vector<128x128xf32> -> vector<128x128xf32>
    %c0_59 = arith.constant 0 : index
    %c0_60 = arith.constant 0 : index
    %91 = vector.load %arg9[%c0_59, %c0_60] : memref<1x128xf32, #tpu.memory_space<vmem>>, vector<1x128xf32>
    %92 = vector.broadcast %91 : vector<1x128xf32> to vector<128x128xf32>
    %93 = arith.addf %90, %92 : vector<128x128xf32>
    %94 = math.tanh %93 : vector<128x128xf32>
    %c0_61 = arith.constant 0 : index
    %c0_62 = arith.constant 0 : index
    %95 = vector.load %arg10[%c0_61, %c0_62] : memref<128x128xf32, #tpu.memory_space<vmem>>, vector<128x128xf32>
    tpu.vector_store %arg10[%c0_61, %c0_62], %94 {strides = array<i32>} : memref<128x128xf32, #tpu.memory_space<vmem>>, vector<128x128xf32>,
    return
  }
  func.func @transform_0(%arg0: i32) -> (i32, i32) {
    %c0_i32 = arith.constant 0 : i32
    %c0_i32_0 = arith.constant 0 : i32
    %c0_i32_1 = arith.constant 0 : i32
    return %c0_i32, %c0_i32_0 : i32, i32
  }
  func.func @transform_1(%arg0: i32) -> (i32, i32) {
    %c0_i32 = arith.constant 0 : i32
    %c0_i32_0 = arith.constant 0 : i32
    %c0_i32_1 = arith.constant 0 : i32
    return %c0_i32, %c0_i32_0 : i32, i32
  }
  func.func @transform_2(%arg0: i32) -> (i32, i32) {
    %c0_i32 = arith.constant 0 : i32
    %c0_i32_0 = arith.constant 0 : i32
    %c0_i32_1 = arith.constant 0 : i32
    return %c0_i32, %c0_i32_0 : i32, i32
  }
  func.func @transform_3(%arg0: i32) -> (i32, i32) {
    %c0_i32 = arith.constant 0 : i32
    %c0_i32_0 = arith.constant 0 : i32
    %c0_i32_1 = arith.constant 0 : i32
    return %c0_i32, %c0_i32_0 : i32, i32
  }
  func.func @transform_4(%arg0: i32) -> (i32, i32) {
    %c0_i32 = arith.constant 0 : i32
    %c0_i32_0 = arith.constant 0 : i32
    %c0_i32_1 = arith.constant 0 : i32
    return %c0_i32, %c0_i32_0 : i32, i32
  }
  func.func @transform_5(%arg0: i32) -> (i32, i32) {
    %c0_i32 = arith.constant 0 : i32
    %c0_i32_0 = arith.constant 0 : i32
    %c0_i32_1 = arith.constant 0 : i32
    return %c0_i32, %c0_i32_0 : i32, i32
  }
  func.func @transform_6(%arg0: i32) -> (i32, i32) {
    %c0_i32 = arith.constant 0 : i32
    %c0_i32_0 = arith.constant 0 : i32
    %c0_i32_1 = arith.constant 0 : i32
    return %c0_i32, %c0_i32_0 : i32, i32
  }
  func.func @transform_7(%arg0: i32) -> (i32, i32) {
    %c0_i32 = arith.constant 0 : i32
    %c0_i32_0 = arith.constant 0 : i32
    %c0_i32_1 = arith.constant 0 : i32
    return %c0_i32, %c0_i32_0 : i32, i32
  }
  func.func @transform_8(%arg0: i32) -> (i32, i32) {
    %c0_i32 = arith.constant 0 : i32
    %c0_i32_0 = arith.constant 0 : i32
    %c0_i32_1 = arith.constant 0 : i32
    return %c0_i32, %c0_i32_0 : i32, i32
  }
  func.func @transform_9(%arg0: i32) -> (i32, i32) {
    %c0_i32 = arith.constant 0 : i32
    %c0_i32_0 = arith.constant 0 : i32
    %c0_i32_1 = arith.constant 0 : i32
    return %c0_i32, %c0_i32_0 : i32, i32
  }
}

</mosaic_0001>

<llo_original>
// kernel: tile.29
$region0: #{tile.29}
  %s0 = inlined_call_operand.vmem [shape: f32[4,64], index: 0, kind: input, shape index: {}]
  %s1 = inlined_call_operand.vmem [shape: f32[1,256], index: 1, kind: output, shape index: {}]
  $region1: #{tile.29} parent=0
    #allocation0 [shape = 'u8[8192]{0}', space=vmem, size = 0x2000, scoped, tag = 'scoped mem for output reshape']
    #allocation1 [shape = 'u8[4096]{0}', space=vmem, size = 0x1000, scoped, tag = 'scoped mem for input reshape']
    %s3 = ssub.s32 16, 1
    %v4 = vld [vmem:[%s0] sm:%s3]
    %5 = vst [vmem:[#allocation1] sm:%s3] %v4
    %s6 = smov 3
    %v7 = vld [vmem:[#allocation1] ss:$2 sm:%s6]
    %vm8 = vcmask 523264
    %9 = vst.msk [vmem:[#allocation0] ss:$8 sm:$0x3] %vm8, %v7
    %s10 = scalar_lea.vmem [#allocation1], 1
    %s11 = smov 3
    %v12 = vld [vmem:[%s10] ss:$2 sm:%s11]
    %13 = vrot.lane.b32.xlu0 %v12, 64
    %v14 = vpop.permute.xlu0 %13
    %vm15 = vcmask 1048064
    %16 = vst.msk [vmem:[#allocation0] ss:$8 sm:$0x3] %vm15, %v14
    %s18 = ssub.s32 2, 1
    %v19 = vld [vmem:[#allocation0] sm:%s18]
    %s21 = ssub.s32 2, 1
    %22 = vst [vmem:[%s1] sm:%s21] %v19
    %s23 = scalar_lea.vmem [#allocation0], 8
    %v24 = vld [vmem:[%s23] sm:%s18]
    %s26 = ssub.s32 2, 1
    %s27 = scalar_lea.vmem %s1, 1
    %28 = vst [vmem:[%s27] sm:%s26] %v24

// kernel: tile.28
$region0: #{tile.28}
  #allocation2 [shape = 's32[1]{0}', space=sflag, size = 0x4, scoped, tag = 'scoped memory for tile.28']
  %s0 = inlined_call_operand.hbm [shape: f32[64], index: 0, kind: input, shape index: {}]
  %s1 = inlined_call_operand.vmem [shape: f32[4,64], index: 1, kind: output, shape index: {}]
  $region1: #{tile.28} parent=0
    #allocation0 [shape = 'u8[512]{0}', space=vmem, size = 0x400, scoped, tag = 'operand span for operand 0']
    #allocation1 [shape = 's32[1]{0}', space=sflag, size = 0x4, scoped, tag = 'scoped memory for tile.28']
    %2 = vsyncpa [#allocation1], 0
    // Predicated region
    $region2: #{tile.28} parent=1 // pred_check
      _
    $region3: #{tile.28} parent=1 // pred_check_branch
      %4 = sbr.rel (0) target = $region5
    $region4: #{tile.28} parent=1 // pred_region
      %6 = vsyncadd [#allocation1], 0
      %s8 = sshll.u32 %s0, 4
      %s9 = int_to_ptr.hbm [resolvable:$true] %s8
      %s10 = sshll.u32 [#allocation0], 4
      %s11 = int_to_ptr.vmem [resolvable:$true] %s10
      %13 = dma.hbm_to_vmem [thread:$0]  %s9, 16, %s11, [#allocation1]
    $region5: #{tile.28} parent=1 // pred_fallthru
      _
    // Predicated region
    $region6: #{tile.28} parent=1 // pred_check
      _
    $region7: #{tile.28} parent=1 // pred_check_branch
      %15 = sbr.rel (0) target = $region9
    $region8: #{tile.28} parent=1 // pred_region
      %17 = dma.done [#allocation1], 16
    $region9: #{tile.28} parent=1 // pred_fallthru
      _
    %v18 = vld [vmem:[#allocation0] ss:$0 sm:$0xff]
    %19 = vst [vmem:[%s1] sm:$0xf] %v18
    %20 = vsyncpa [#allocation1], 1

// kernel: tile.18
$region0: #{tile.18}
  #allocation0 [shape = 's32[1]{0}', space=sflag, size = 0x4, scoped, tag = 'scoped memory for tile.18']
  %s0 = inlined_call_operand.vmem [shape: f32[8], index: 0, kind: input, shape index: {}]
  %s1 = inlined_call_operand.vmem [shape: f32[16,8], index: 1, kind: output, shape index: {}]
  // Predicated region
  $region2: #{tile.18} parent=0 // pred_check
    _
  $region3: #{tile.18} parent=0 // pred_check_branch
    %3 = sbr.rel (0) target = $region5
  $region4: #{tile.18} parent=0 // pred_region
    _
  $region5: #{tile.18} parent=0 // pred_fallthru
    _
  %v4 = vld [vmem:[%s0] ss:$0 sm:$0xff]
  %5 = vst [vmem:[%s1] sm:$0xff] %v4
  %s6 = scalar_lea.vmem %s1, 8
  %7 = vst [vmem:[%s6] sm:$0xff] %v4

// kernel: tile.19
$region0: #{tile.19}
  %s0 = inlined_call_operand.vmem [shape: f32[16,8], index: 0, kind: input, shape index: {}]
  %s1 = inlined_call_operand.vmem [shape: f32[1,128], index: 1, kind: output, shape index: {}]
  $region1: #{tile.19} parent=0
    #allocation0 [shape = 'u8[4096]{0}', space=vmem, size = 0x1000, scoped, tag = 'scoped mem for output reshape']
    %v2 = vld [vmem:[%s0] sm:$0x1]
    %vm3 = vcmask 64512
    %4 = vst.msk [vmem:[#allocation0] sm:$0x1] %vm3, %v2
    %s5 = scalar_lea.vmem %s0, 15
    %v6 = vld [vmem:[%s5] sm:$0x1]
    %7 = vrot.lane.b32.xlu0 %v6, 120
    %v8 = vpop.permute.xlu0 %7
    %vm9 = vcmask 1048512
    %10 = vst.msk [vmem:[#allocation0] sm:$0x1] %vm9, %v8
    %s11 = scalar_lea.vmem %s0, 14
    %v12 = vld [vmem:[%s11] sm:$0x1]
    %13 = vrot.lane.b32.xlu0 %v12, 112
    %v14 = vpop.permute.xlu0 %13
    %vm15 = vcmask 982912
    %16 = vst.msk [vmem:[#allocation0] sm:$0x1] %vm15, %v14
    %s17 = scalar_lea.vmem %s0, 13
    %v18 = vld [vmem:[%s17] sm:$0x1]
    %19 = vrot.lane.b32.xlu0 %v18, 104
    %v20 = vpop.permute.xlu0 %19
    %vm21 = vcmask 917312
    %22 = vst.msk [vmem:[#allocation0] sm:$0x1] %vm21, %v20
    %s23 = scalar_lea.vmem %s0, 12
    %v24 = vld [vmem:[%s23] sm:$0x1]
    %25 = vrot.lane.b32.xlu0 %v24, 96
    %v26 = vpop.permute.xlu0 %25
    %vm27 = vcmask 851712
    %28 = vst.msk [vmem:[#allocation0] sm:$0x1] %vm27, %v26
    %s29 = scalar_lea.vmem %s0, 11
    %v30 = vld [vmem:[%s29] sm:$0x1]
    %31 = vrot.lane.b32.xlu0 %v30, 88
    %v32 = vpop.permute.xlu0 %31
    %vm33 = vcmask 786112
    %34 = vst.msk [vmem:[#allocation0] sm:$0x1] %vm33, %v32
    %s35 = scalar_lea.vmem %s0, 10
    %v36 = vld [vmem:[%s35] sm:$0x1]
    %37 = vrot.lane.b32.xlu0 %v36, 80
    %v38 = vpop.permute.xlu0 %37
    %vm39 = vcmask 720512
    %40 = vst.msk [vmem:[#allocation0] sm:$0x1] %vm39, %v38
    %s41 = scalar_lea.vmem %s0, 9
    %v42 = vld [vmem:[%s41] sm:$0x1]
    %43 = vrot.lane.b32.xlu0 %v42, 72
    %v44 = vpop.permute.xlu0 %43
    %vm45 = vcmask 654912
    %46 = vst.msk [vmem:[#allocation0] sm:$0x1] %vm45, %v44
    %s47 = scalar_lea.vmem %s0, 8
    %v48 = vld [vmem:[%s47] sm:$0x1]
    %49 = vrot.lane.b32.xlu0 %v48, 64
    %v50 = vpop.permute.xlu0 %49
    %vm51 = vcmask 589312
    %52 = vst.msk [vmem:[#allocation0] sm:$0x1] %vm51, %v50
    %s53 = scalar_lea.vmem %s0, 7
    %v54 = vld [vmem:[%s53] sm:$0x1]
    %55 = vrot.lane.b32.xlu0 %v54, 56
    %v56 = vpop.permute.xlu0 %55
    %vm57 = vcmask 523712
    %58 = vst.msk [vmem:[#allocation0] sm:$0x1] %vm57, %v56
    %s59 = scalar_lea.vmem %s0, 6
    %v60 = vld [vmem:[%s59] sm:$0x1]
    %61 = vrot.lane.b32.xlu0 %v60, 48
    %v62 = vpop.permute.xlu0 %61
    %vm63 = vcmask 458112
    %64 = vst.msk [vmem:[#allocation0] sm:$0x1] %vm63, %v62
    %s65 = scalar_lea.vmem %s0, 5
    %v66 = vld [vmem:[%s65] sm:$0x1]
    %67 = vrot.lane.b32.xlu0 %v66, 40
    %v68 = vpop.permute.xlu0 %67
    %vm69 = vcmask 392512
    %70 = vst.msk [vmem:[#allocation0] sm:$0x1] %vm69, %v68
    %s71 = scalar_lea.vmem %s0, 4
    %v72 = vld [vmem:[%s71] sm:$0x1]
    %73 = vrot.lane.b32.xlu0 %v72, 32
    %v74 = vpop.permute.xlu0 %73
    %vm75 = vcmask 326912
    %76 = vst.msk [vmem:[#allocation0] sm:$0x1] %vm75, %v74
    %s77 = scalar_lea.vmem %s0, 3
    %v78 = vld [vmem:[%s77] sm:$0x1]
    %79 = vrot.lane.b32.xlu0 %v78, 24
    %v80 = vpop.permute.xlu0 %79
    %vm81 = vcmask 261312
    %82 = vst.msk [vmem:[#allocation0] sm:$0x1] %vm81, %v80
    %s83 = scalar_lea.vmem %s0, 2
    %v84 = vld [vmem:[%s83] sm:$0x1]
    %85 = vrot.lane.b32.xlu0 %v84, 16
    %v86 = vpop.permute.xlu0 %85
    %vm87 = vcmask 195712
    %88 = vst.msk [vmem:[#allocation0] sm:$0x1] %vm87, %v86
    %s89 = scalar_lea.vmem %s0, 1
    %v90 = vld [vmem:[%s89] sm:$0x1]
    %91 = vrot.lane.b32.xlu0 %v90, 8
    %v92 = vpop.permute.xlu0 %91
    %vm93 = vcmask 130112
    %94 = vst.msk [vmem:[#allocation0] sm:$0x1] %vm93, %v92
    %s96 = ssub.s32 2, 1
    %v97 = vld [vmem:[#allocation0] sm:%s96]
    %s99 = ssub.s32 2, 1
    %100 = vst [vmem:[%s1] sm:%s99] %v97

// kernel: decoder_forward.1
$region0: #{decoder_forward.1}
  #allocation0 [shape = 'u32[]', space=smem, size = 0x4, offset = 0x4, fixed_abs, tag = 'smem constant byte address 0x4 - core index']
  #allocation1 [shape = 'u32[72,128]{1,0:T(1,128)}', space=vmem, size = 0x9000, scoped, tag = 'internal scratch']
  #allocation2 [shape = 'f32[128,128]{1,0:T(8,128)}', space=vmem, size = 0x10000, scoped, tag = 'scratch operand']
  #allocation3 [shape = 'f32[128,256]{1,0:T(8,128)}', space=vmem, size = 0x20000, scoped, tag = 'scratch operand']
  %s0 = inlined_call_operand.vmem [shape: f32[32,256], index: 0, kind: input, shape index: {}]
  %s1 = inlined_call_operand.vmem [shape: bf16[256,512], index: 1, kind: input, shape index: {}]
  %s2 = inlined_call_operand.vmem [shape: f32[1,128], index: 2, kind: input, shape index: {}]
  %s3 = inlined_call_operand.vmem [shape: f32[1,128], index: 3, kind: input, shape index: {}]
  %s4 = inlined_call_operand.vmem [shape: bf16[128,256], index: 4, kind: input, shape index: {}]
  %s5 = inlined_call_operand.vmem [shape: f32[1,256], index: 5, kind: input, shape index: {}]
  %s6 = inlined_call_operand.vmem [shape: f32[1,256], index: 6, kind: input, shape index: {}]
  %s7 = inlined_call_operand.vmem [shape: bf16[256,128], index: 7, kind: input, shape index: {}]
  %s8 = inlined_call_operand.vmem [shape: f32[1,128], index: 8, kind: input, shape index: {}]
  %s9 = inlined_call_operand.vmem [shape: f32[128,128], index: 9, kind: output, shape index: {}]
  %s10 = sld [smem:[#allocation0]]
  $region46: #{decoder_forward.1} parent=0
    _
  %s12 = ssub.s32 1, %s10
  %s13 = scalar_select 0, %s12, %s10
  // Predicated region
  $region2: #{decoder_forward.1} parent=0 // pred_check
    _
  $region3: #{decoder_forward.1} parent=0 // pred_check_branch
    %15 = sbr.rel (0) target = $region5
  $region4: #{decoder_forward.1} parent=0 // pred_region
    _
  $region5: #{decoder_forward.1} parent=0 // pred_fallthru
    _
  // Predicated region
  $region6: #{decoder_forward.1} parent=0 // pred_check
    _
  $region7: #{decoder_forward.1} parent=0 // pred_check_branch
    %17 = sbr.rel (0) target = $region9
  $region8: #{decoder_forward.1} parent=0 // pred_region
    _
  $region9: #{decoder_forward.1} parent=0 // pred_fallthru
    _
  // Predicated region
  $region10: #{decoder_forward.1} parent=0 // pred_check
    _
  $region11: #{decoder_forward.1} parent=0 // pred_check_branch
    %19 = sbr.rel (0) target = $region13
  $region12: #{decoder_forward.1} parent=0 // pred_region
    _
  $region13: #{decoder_forward.1} parent=0 // pred_fallthru
    _
  // Predicated region
  $region14: #{decoder_forward.1} parent=0 // pred_check
    _
  $region15: #{decoder_forward.1} parent=0 // pred_check_branch
    %21 = sbr.rel (0) target = $region17
  $region16: #{decoder_forward.1} parent=0 // pred_region
    _
  $region17: #{decoder_forward.1} parent=0 // pred_fallthru
    _
  // Predicated region
  $region18: #{decoder_forward.1} parent=0 // pred_check
    _
  $region19: #{decoder_forward.1} parent=0 // pred_check_branch
    %23 = sbr.rel (0) target = $region21
  $region20: #{decoder_forward.1} parent=0 // pred_region
    _
  $region21: #{decoder_forward.1} parent=0 // pred_fallthru
    _
  // Predicated region
  $region22: #{decoder_forward.1} parent=0 // pred_check
    _
  $region23: #{decoder_forward.1} parent=0 // pred_check_branch
    %25 = sbr.rel (0) target = $region25
  $region24: #{decoder_forward.1} parent=0 // pred_region
    _
  $region25: #{decoder_forward.1} parent=0 // pred_fallthru
    _
  // Predicated region
  $region26: #{decoder_forward.1} parent=0 // pred_check
    _
  $region27: #{decoder_forward.1} parent=0 // pred_check_branch
    %27 = sbr.rel (0) target = $region29
  $region28: #{decoder_forward.1} parent=0 // pred_region
    _
  $region29: #{decoder_forward.1} parent=0 // pred_fallthru
    _
  // Predicated region
  $region30: #{decoder_forward.1} parent=0 // pred_check
    _
  $region31: #{decoder_forward.1} parent=0 // pred_check_branch
    %29 = sbr.rel (0) target = $region33
  $region32: #{decoder_forward.1} parent=0 // pred_region
    _
  $region33: #{decoder_forward.1} parent=0 // pred_fallthru
    _
  // Predicated region
  $region34: #{decoder_forward.1} parent=0 // pred_check
    _
  $region35: #{decoder_forward.1} parent=0 // pred_check_branch
    %31 = sbr.rel (0) target = $region37
  $region36: #{decoder_forward.1} parent=0 // pred_region
    _
  $region37: #{decoder_forward.1} parent=0 // pred_fallthru
    _
  %v32 = vld [vmem:[%s0] sm:$0xff]
  %v33 = vld [vmem:[%s0 + $0x8] sm:$0xff]
  %v34 = vld [vmem:[%s0 + $0x10] sm:$0xff]
  %v35 = vld [vmem:[%s0 + $0x18] sm:$0xff]
  %v36 = vld [vmem:[%s0 + $0x20] sm:$0xff]
  %v37 = vld [vmem:[%s0 + $0x28] sm:$0xff]
  %v38 = vld [vmem:[%s0 + $0x30] sm:$0xff]
  %v39 = vld [vmem:[%s0 + $0x38] sm:$0xff]
  %v40 = vpack.c.bf16 %v34, %v32
  %v41 = vpack.c.bf16 %v35, %v33
  %v42 = vpack.c.bf16 %v38, %v36
  %v43 = vpack.c.bf16 %v39, %v37
  %v44 = vld [vmem:[%s1] sm:$0xff]
  %v45 = vld [vmem:[%s1 + $0x8] sm:$0xff]
  %v46 = vld [vmem:[%s1 + $0x10] sm:$0xff]
  %v47 = vld [vmem:[%s1 + $0x18] sm:$0xff]
  %v48 = vld [vmem:[%s1 + $0x20] sm:$0xff]
  %v49 = vld [vmem:[%s1 + $0x28] sm:$0xff]
  %v50 = vld [vmem:[%s1 + $0x30] sm:$0xff]
  %v51 = vld [vmem:[%s1 + $0x38] sm:$0xff]
  %v52 = vld [vmem:[%s1 + $0x40] sm:$0xff]
  %v53 = vld [vmem:[%s1 + $0x48] sm:$0xff]
  %v54 = vld [vmem:[%s1 + $0x50] sm:$0xff]
  %v55 = vld [vmem:[%s1 + $0x58] sm:$0xff]
  %v56 = vld [vmem:[%s1 + $0x60] sm:$0xff]
  %v57 = vld [vmem:[%s1 + $0x68] sm:$0xff]
  %v58 = vld [vmem:[%s1 + $0x70] sm:$0xff]
  %v59 = vld [vmem:[%s1 + $0x78] sm:$0xff]
  %v60 = vld [vmem:[%s1 + $0x80] sm:$0xff]
  %v61 = vld [vmem:[%s1 + $0x88] sm:$0xff]
  %v62 = vld [vmem:[%s1 + $0x90] sm:$0xff]
  %v63 = vld [vmem:[%s1 + $0x98] sm:$0xff]
  %v64 = vld [vmem:[%s1 + $0xa0] sm:$0xff]
  %v65 = vld [vmem:[%s1 + $0xa8] sm:$0xff]
  %v66 = vld [vmem:[%s1 + $0xb0] sm:$0xff]
  %v67 = vld [vmem:[%s1 + $0xb8] sm:$0xff]
  %v68 = vld [vmem:[%s1 + $0xc0] sm:$0xff]
  %v69 = vld [vmem:[%s1 + $0xc8] sm:$0xff]
  %v70 = vld [vmem:[%s1 + $0xd0] sm:$0xff]
  %v71 = vld [vmem:[%s1 + $0xd8] sm:$0xff]
  %v72 = vld [vmem:[%s1 + $0xe0] sm:$0xff]
  %v73 = vld [vmem:[%s1 + $0xe8] sm:$0xff]
  %v74 = vld [vmem:[%s1 + $0xf0] sm:$0xff]
  %v75 = vld [vmem:[%s1 + $0xf8] sm:$0xff]
  %v76 = vld [vmem:[%s1 + $0x100] sm:$0xff]
  %v77 = vld [vmem:[%s1 + $0x108] sm:$0xff]
  %v78 = vld [vmem:[%s1 + $0x110] sm:$0xff]
  %v79 = vld [vmem:[%s1 + $0x118] sm:$0xff]
  %v80 = vld [vmem:[%s1 + $0x120] sm:$0xff]
  %v81 = vld [vmem:[%s1 + $0x128] sm:$0xff]
  %v82 = vld [vmem:[%s1 + $0x130] sm:$0xff]
  %v83 = vld [vmem:[%s1 + $0x138] sm:$0xff]
  %v84 = vld [vmem:[%s1 + $0x140] sm:$0xff]
  %v85 = vld [vmem:[%s1 + $0x148] sm:$0xff]
  %v86 = vld [vmem:[%s1 + $0x150] sm:$0xff]
  %v87 = vld [vmem:[%s1 + $0x158] sm:$0xff]
  %v88 = vld [vmem:[%s1 + $0x160] sm:$0xff]
  %v89 = vld [vmem:[%s1 + $0x168] sm:$0xff]
  %v90 = vld [vmem:[%s1 + $0x170] sm:$0xff]
  %v91 = vld [vmem:[%s1 + $0x178] sm:$0xff]
  %v92 = vld [vmem:[%s1 + $0x180] sm:$0xff]
  %v93 = vld [vmem:[%s1 + $0x188] sm:$0xff]
  %v94 = vld [vmem:[%s1 + $0x190] sm:$0xff]
  %v95 = vld [vmem:[%s1 + $0x198] sm:$0xff]
  %v96 = vld [vmem:[%s1 + $0x1a0] sm:$0xff]
  %v97 = vld [vmem:[%s1 + $0x1a8] sm:$0xff]
  %v98 = vld [vmem:[%s1 + $0x1b0] sm:$0xff]
  %v99 = vld [vmem:[%s1 + $0x1b8] sm:$0xff]
  %v100 = vld [vmem:[%s1 + $0x1c0] sm:$0xff]
  %v101 = vld [vmem:[%s1 + $0x1c8] sm:$0xff]
  %v102 = vld [vmem:[%s1 + $0x1d0] sm:$0xff]
  %v103 = vld [vmem:[%s1 + $0x1d8] sm:$0xff]
  %v104 = vld [vmem:[%s1 + $0x1e0] sm:$0xff]
  %v105 = vld [vmem:[%s1 + $0x1e8] sm:$0xff]
  %v106 = vld [vmem:[%s1 + $0x1f0] sm:$0xff]
  %v107 = vld [vmem:[%s1 + $0x1f8] sm:$0xff]
  %v172 = vunpack.c.l.b16 %v44
  %v173 = vunpack.c.h.b16 %v44
  %v174 = vunpack.c.l.b16 %v45
  %v175 = vunpack.c.h.b16 %v45
  %v176 = vunpack.c.l.b16 %v46
  %v177 = vunpack.c.h.b16 %v46
  %v178 = vunpack.c.l.b16 %v47
  %v179 = vunpack.c.h.b16 %v47
  %v180 = vunpack.c.l.b16 %v48
  %v181 = vunpack.c.h.b16 %v48
  %v182 = vunpack.c.l.b16 %v49
  %v183 = vunpack.c.h.b16 %v49
  %v184 = vunpack.c.l.b16 %v50
  %v185 = vunpack.c.h.b16 %v50
  %v186 = vunpack.c.l.b16 %v51
  %v187 = vunpack.c.h.b16 %v51
  %v188 = vunpack.c.l.b16 %v52
  %v189 = vunpack.c.h.b16 %v52
  %v190 = vunpack.c.l.b16 %v53
  %v191 = vunpack.c.h.b16 %v53
  %v192 = vunpack.c.l.b16 %v54
  %v193 = vunpack.c.h.b16 %v54
  %v194 = vunpack.c.l.b16 %v55
  %v195 = vunpack.c.h.b16 %v55
  %v196 = vunpack.c.l.b16 %v56
  %v197 = vunpack.c.h.b16 %v56
  %v198 = vunpack.c.l.b16 %v57
  %v199 = vunpack.c.h.b16 %v57
  %v200 = vunpack.c.l.b16 %v58
  %v201 = vunpack.c.h.b16 %v58
  %v202 = vunpack.c.l.b16 %v59
  %v203 = vunpack.c.h.b16 %v59
  %v204 = vunpack.c.l.b16 %v60
  %v205 = vunpack.c.h.b16 %v60
  %v206 = vunpack.c.l.b16 %v61
  %v207 = vunpack.c.h.b16 %v61
  %v208 = vunpack.c.l.b16 %v62
  %v209 = vunpack.c.h.b16 %v62
  %v210 = vunpack.c.l.b16 %v63
  %v211 = vunpack.c.h.b16 %v63
  %v212 = vunpack.c.l.b16 %v64
  %v213 = vunpack.c.h.b16 %v64
  %v214 = vunpack.c.l.b16 %v65
  %v215 = vunpack.c.h.b16 %v65
  %v216 = vunpack.c.l.b16 %v66
  %v217 = vunpack.c.h.b16 %v66
  %v218 = vunpack.c.l.b16 %v67
  %v219 = vunpack.c.h.b16 %v67
  %v220 = vunpack.c.l.b16 %v68
  %v221 = vunpack.c.h.b16 %v68
  %v222 = vunpack.c.l.b16 %v69
  %v223 = vunpack.c.h.b16 %v69
  %v224 = vunpack.c.l.b16 %v70
  %v225 = vunpack.c.h.b16 %v70
  %v226 = vunpack.c.l.b16 %v71
  %v227 = vunpack.c.h.b16 %v71
  %v228 = vunpack.c.l.b16 %v72
  %v229 = vunpack.c.h.b16 %v72
  %v230 = vunpack.c.l.b16 %v73
  %v231 = vunpack.c.h.b16 %v73
  %v232 = vunpack.c.l.b16 %v74
  %v233 = vunpack.c.h.b16 %v74
  %v234 = vunpack.c.l.b16 %v75
  %v235 = vunpack.c.h.b16 %v75
  %v236 = vunpack.c.l.b16 %v76
  %v237 = vunpack.c.h.b16 %v76
  %v238 = vunpack.c.l.b16 %v77
  %v239 = vunpack.c.h.b16 %v77
  %v240 = vunpack.c.l.b16 %v78
  %v241 = vunpack.c.h.b16 %v78
  %v242 = vunpack.c.l.b16 %v79
  %v243 = vunpack.c.h.b16 %v79
  %v244 = vunpack.c.l.b16 %v80
  %v245 = vunpack.c.h.b16 %v80
  %v246 = vunpack.c.l.b16 %v81
  %v247 = vunpack.c.h.b16 %v81
  %v248 = vunpack.c.l.b16 %v82
  %v249 = vunpack.c.h.b16 %v82
  %v250 = vunpack.c.l.b16 %v83
  %v251 = vunpack.c.h.b16 %v83
  %v252 = vunpack.c.l.b16 %v84
  %v253 = vunpack.c.h.b16 %v84
  %v254 = vunpack.c.l.b16 %v85
  %v255 = vunpack.c.h.b16 %v85
  %v256 = vunpack.c.l.b16 %v86
  %v257 = vunpack.c.h.b16 %v86
  %v258 = vunpack.c.l.b16 %v87
  %v259 = vunpack.c.h.b16 %v87
  %v260 = vunpack.c.l.b16 %v88
  %v261 = vunpack.c.h.b16 %v88
  %v262 = vunpack.c.l.b16 %v89
  %v263 = vunpack.c.h.b16 %v89
  %v264 = vunpack.c.l.b16 %v90
  %v265 = vunpack.c.h.b16 %v90
  %v266 = vunpack.c.l.b16 %v91
  %v267 = vunpack.c.h.b16 %v91
  %v268 = vunpack.c.l.b16 %v92
  %v269 = vunpack.c.h.b16 %v92
  %v270 = vunpack.c.l.b16 %v93
  %v271 = vunpack.c.h.b16 %v93
  %v272 = vunpack.c.l.b16 %v94
  %v273 = vunpack.c.h.b16 %v94
  %v274 = vunpack.c.l.b16 %v95
  %v275 = vunpack.c.h.b16 %v95
  %v276 = vunpack.c.l.b16 %v96
  %v277 = vunpack.c.h.b16 %v96
  %v278 = vunpack.c.l.b16 %v97
  %v279 = vunpack.c.h.b16 %v97
  %v280 = vunpack.c.l.b16 %v98
  %v281 = vunpack.c.h.b16 %v98
  %v282 = vunpack.c.l.b16 %v99
  %v283 = vunpack.c.h.b16 %v99
  %v284 = vunpack.c.l.b16 %v100
  %v285 = vunpack.c.h.b16 %v100
  %v286 = vunpack.c.l.b16 %v101
  %v287 = vunpack.c.h.b16 %v101
  %v288 = vunpack.c.l.b16 %v102
  %v289 = vunpack.c.h.b16 %v102
  %v290 = vunpack.c.l.b16 %v103
  %v291 = vunpack.c.h.b16 %v103
  %v292 = vunpack.c.l.b16 %v104
  %v293 = vunpack.c.h.b16 %v104
  %v294 = vunpack.c.l.b16 %v105
  %v295 = vunpack.c.h.b16 %v105
  %v296 = vunpack.c.l.b16 %v106
  %v297 = vunpack.c.h.b16 %v106
  %v298 = vunpack.c.l.b16 %v107
  %v299 = vunpack.c.h.b16 %v107
  %v300 = vpack.c.b16 %v176, %v172
  %v301 = vpack.c.b16 %v177, %v173
  %v302 = vpack.c.b16 %v178, %v174
  %v303 = vpack.c.b16 %v179, %v175
  %v304 = vpack.c.b16 %v184, %v180
  %v305 = vpack.c.b16 %v185, %v181
  %v306 = vpack.c.b16 %v186, %v182
  %v307 = vpack.c.b16 %v187, %v183
  %v308 = vpack.c.b16 %v192, %v188
  %v309 = vpack.c.b16 %v193, %v189
  %v310 = vpack.c.b16 %v194, %v190
  %v311 = vpack.c.b16 %v195, %v191
  %v312 = vpack.c.b16 %v200, %v196
  %v313 = vpack.c.b16 %v201, %v197
  %v314 = vpack.c.b16 %v202, %v198
  %v315 = vpack.c.b16 %v203, %v199
  %v316 = vpack.c.b16 %v208, %v204
  %v317 = vpack.c.b16 %v209, %v205
  %v318 = vpack.c.b16 %v210, %v206
  %v319 = vpack.c.b16 %v211, %v207
  %v320 = vpack.c.b16 %v216, %v212
  %v321 = vpack.c.b16 %v217, %v213
  %v322 = vpack.c.b16 %v218, %v214
  %v323 = vpack.c.b16 %v219, %v215
  %v324 = vpack.c.b16 %v224, %v220
  %v325 = vpack.c.b16 %v225, %v221
  %v326 = vpack.c.b16 %v226, %v222
  %v327 = vpack.c.b16 %v227, %v223
  %v328 = vpack.c.b16 %v232, %v228
  %v329 = vpack.c.b16 %v233, %v229
  %v330 = vpack.c.b16 %v234, %v230
  %v331 = vpack.c.b16 %v235, %v231
  %v332 = vpack.c.b16 %v240, %v236
  %v333 = vpack.c.b16 %v241, %v237
  %v334 = vpack.c.b16 %v242, %v238
  %v335 = vpack.c.b16 %v243, %v239
  %v336 = vpack.c.b16 %v248, %v244
  %v337 = vpack.c.b16 %v249, %v245
  %v338 = vpack.c.b16 %v250, %v246
  %v339 = vpack.c.b16 %v251, %v247
  %v340 = vpack.c.b16 %v256, %v252
  %v341 = vpack.c.b16 %v257, %v253
  %v342 = vpack.c.b16 %v258, %v254
  %v343 = vpack.c.b16 %v259, %v255
  %v344 = vpack.c.b16 %v264, %v260
  %v345 = vpack.c.b16 %v265, %v261
  %v346 = vpack.c.b16 %v266, %v262
  %v347 = vpack.c.b16 %v267, %v263
  %v348 = vpack.c.b16 %v272, %v268
  %v349 = vpack.c.b16 %v273, %v269
  %v350 = vpack.c.b16 %v274, %v270
  %v351 = vpack.c.b16 %v275, %v271
  %v352 = vpack.c.b16 %v280, %v276
  %v353 = vpack.c.b16 %v281, %v277
  %v354 = vpack.c.b16 %v282, %v278
  %v355 = vpack.c.b16 %v283, %v279
  %v356 = vpack.c.b16 %v288, %v284
  %v357 = vpack.c.b16 %v289, %v285
  %v358 = vpack.c.b16 %v290, %v286
  %v359 = vpack.c.b16 %v291, %v287
  %v360 = vpack.c.b16 %v296, %v292
  %v361 = vpack.c.b16 %v297, %v293
  %v362 = vpack.c.b16 %v298, %v294
  %v363 = vpack.c.b16 %v299, %v295
  %428 = vmatpush.bf16.msra.mxu0 %v328
  %429 = vmatpush.bf16.msra.mxu0 %v324
  %430 = vmatpush.bf16.msra.mxu0 %v320
  %431 = vmatpush.bf16.msra.mxu0 %v316
  %432 = vmatpush.bf16.msra.mxu0 %v312
  %433 = vmatpush.bf16.msra.mxu0 %v308
  %434 = vmatpush.bf16.msra.mxu0 %v304
  %435 = vmatpush.bf16.msra.mxu0 %v300
  %436 = vmatmul.bf16.gmra.mxu0 %v40
  %v437 = vpop.f32.mrf.mxu0
  %v438 = vadd.f32 0.0, %v437
  %v439 = vpop.f32.mrf.mxu0
  %v440 = vadd.f32 0.0, %v439
  %441 = vmatmul.bf16.gmra.mxu0 %v42
  %v442 = vpop.f32.mrf.mxu0
  %v443 = vadd.f32 0.0, %v442
  %v444 = vpop.f32.mrf.mxu0
  %v445 = vadd.f32 0.0, %v444
  %446 = vdwg.mxu0
  %447 = vmatpush.bf16.msra.mxu0 %v360
  %448 = vmatpush.bf16.msra.mxu0 %v356
  %449 = vmatpush.bf16.msra.mxu0 %v352
  %450 = vmatpush.bf16.msra.mxu0 %v348
  %451 = vmatpush.bf16.msra.mxu0 %v344
  %452 = vmatpush.bf16.msra.mxu0 %v340
  %453 = vmatpush.bf16.msra.mxu0 %v336
  %454 = vmatpush.bf16.msra.mxu0 %v332
  %455 = vmatmul.bf16.gmra.mxu0 %v41
  %v456 = vpop.f32.mrf.mxu0
  %v457 = vadd.f32 %v438, %v456
  %v458 = vpop.f32.mrf.mxu0
  %v459 = vadd.f32 %v440, %v458
  %460 = vmatmul.bf16.gmra.mxu0 %v43
  %v461 = vpop.f32.mrf.mxu0
  %v462 = vadd.f32 %v443, %v461
  %v463 = vpop.f32.mrf.mxu0
  %v464 = vadd.f32 %v445, %v463
  %465 = vdwg.mxu0
  %466 = vmatpush.bf16.msra.mxu0 %v329
  %467 = vmatpush.bf16.msra.mxu0 %v325
  %468 = vmatpush.bf16.msra.mxu0 %v321
  %469 = vmatpush.bf16.msra.mxu0 %v317
  %470 = vmatpush.bf16.msra.mxu0 %v313
  %471 = vmatpush.bf16.msra.mxu0 %v309
  %472 = vmatpush.bf16.msra.mxu0 %v305
  %473 = vmatpush.bf16.msra.mxu0 %v301
  %474 = vmatmul.bf16.gmra.mxu0 %v40
  %v475 = vpop.f32.mrf.mxu0
  %v476 = vadd.f32 0.0, %v475
  %v477 = vpop.f32.mrf.mxu0
  %v478 = vadd.f32 0.0, %v477
  %479 = vmatmul.bf16.gmra.mxu0 %v42
  %v480 = vpop.f32.mrf.mxu0
  %v481 = vadd.f32 0.0, %v480
  %v482 = vpop.f32.mrf.mxu0
  %v483 = vadd.f32 0.0, %v482
  %484 = vdwg.mxu0
  %485 = vmatpush.bf16.msra.mxu0 %v361
  %486 = vmatpush.bf16.msra.mxu0 %v357
  %487 = vmatpush.bf16.msra.mxu0 %v353
  %488 = vmatpush.bf16.msra.mxu0 %v349
  %489 = vmatpush.bf16.msra.mxu0 %v345
  %490 = vmatpush.bf16.msra.mxu0 %v341
  %491 = vmatpush.bf16.msra.mxu0 %v337
  %492 = vmatpush.bf16.msra.mxu0 %v333
  %493 = vmatmul.bf16.gmra.mxu0 %v41
  %v494 = vpop.f32.mrf.mxu0
  %v495 = vadd.f32 %v476, %v494
  %v496 = vpop.f32.mrf.mxu0
  %v497 = vadd.f32 %v478, %v496
  %498 = vmatmul.bf16.gmra.mxu0 %v43
  %v499 = vpop.f32.mrf.mxu0
  %v500 = vadd.f32 %v481, %v499
  %v501 = vpop.f32.mrf.mxu0
  %v502 = vadd.f32 %v483, %v501
  %503 = vdwg.mxu0
  %504 = vmatpush.bf16.msra.mxu0 %v330
  %505 = vmatpush.bf16.msra.mxu0 %v326
  %506 = vmatpush.bf16.msra.mxu0 %v322
  %507 = vmatpush.bf16.msra.mxu0 %v318
  %508 = vmatpush.bf16.msra.mxu0 %v314
  %509 = vmatpush.bf16.msra.mxu0 %v310
  %510 = vmatpush.bf16.msra.mxu0 %v306
  %511 = vmatpush.bf16.msra.mxu0 %v302
  %512 = vmatmul.bf16.gmra.mxu0 %v40
  %v513 = vpop.f32.mrf.mxu0
  %v514 = vadd.f32 0.0, %v513
  %v515 = vpop.f32.mrf.mxu0
  %v516 = vadd.f32 0.0, %v515
  %517 = vmatmul.bf16.gmra.mxu0 %v42
  %v518 = vpop.f32.mrf.mxu0
  %v519 = vadd.f32 0.0, %v518
  %v520 = vpop.f32.mrf.mxu0
  %v521 = vadd.f32 0.0, %v520
  %522 = vdwg.mxu0
  %523 = vmatpush.bf16.msra.mxu0 %v362
  %524 = vmatpush.bf16.msra.mxu0 %v358
  %525 = vmatpush.bf16.msra.mxu0 %v354
  %526 = vmatpush.bf16.msra.mxu0 %v350
  %527 = vmatpush.bf16.msra.mxu0 %v346
  %528 = vmatpush.bf16.msra.mxu0 %v342
  %529 = vmatpush.bf16.msra.mxu0 %v338
  %530 = vmatpush.bf16.msra.mxu0 %v334
  %531 = vmatmul.bf16.gmra.mxu0 %v41
  %v532 = vpop.f32.mrf.mxu0
  %v533 = vadd.f32 %v514, %v532
  %v534 = vpop.f32.mrf.mxu0
  %v535 = vadd.f32 %v516, %v534
  %536 = vmatmul.bf16.gmra.mxu0 %v43
  %v537 = vpop.f32.mrf.mxu0
  %v538 = vadd.f32 %v519, %v537
  %v539 = vpop.f32.mrf.mxu0
  %v540 = vadd.f32 %v521, %v539
  %541 = vdwg.mxu0
  %542 = vmatpush.bf16.msra.mxu0 %v331
  %543 = vmatpush.bf16.msra.mxu0 %v327
  %544 = vmatpush.bf16.msra.mxu0 %v323
  %545 = vmatpush.bf16.msra.mxu0 %v319
  %546 = vmatpush.bf16.msra.mxu0 %v315
  %547 = vmatpush.bf16.msra.mxu0 %v311
  %548 = vmatpush.bf16.msra.mxu0 %v307
  %549 = vmatpush.bf16.msra.mxu0 %v303
  %550 = vmatmul.bf16.gmra.mxu0 %v40
  %v551 = vpop.f32.mrf.mxu0
  %v552 = vadd.f32 0.0, %v551
  %v553 = vpop.f32.mrf.mxu0
  %v554 = vadd.f32 0.0, %v553
  %555 = vmatmul.bf16.gmra.mxu0 %v42
  %v556 = vpop.f32.mrf.mxu0
  %v557 = vadd.f32 0.0, %v556
  %v558 = vpop.f32.mrf.mxu0
  %v559 = vadd.f32 0.0, %v558
  %560 = vdwg.mxu0
  %561 = vmatpush.bf16.msra.mxu0 %v363
  %562 = vmatpush.bf16.msra.mxu0 %v359
  %563 = vmatpush.bf16.msra.mxu0 %v355
  %564 = vmatpush.bf16.msra.mxu0 %v351
  %565 = vmatpush.bf16.msra.mxu0 %v347
  %566 = vmatpush.bf16.msra.mxu0 %v343
  %567 = vmatpush.bf16.msra.mxu0 %v339
  %568 = vmatpush.bf16.msra.mxu0 %v335
  %569 = vmatmul.bf16.gmra.mxu0 %v41
  %v570 = vpop.f32.mrf.mxu0
  %v571 = vadd.f32 %v552, %v570
  %v572 = vpop.f32.mrf.mxu0
  %v573 = vadd.f32 %v554, %v572
  %574 = vmatmul.bf16.gmra.mxu0 %v43
  %v575 = vpop.f32.mrf.mxu0
  %v576 = vadd.f32 %v557, %v575
  %v577 = vpop.f32.mrf.mxu0
  %v578 = vadd.f32 %v559, %v577
  %579 = vdwg.mxu0
  %v580 = vmax.f32 %v457, 0.0
  %v581 = vmax.f32 %v495, 0.0
  %v582 = vmax.f32 %v533, 0.0
  %v583 = vmax.f32 %v571, 0.0
  %v584 = vmax.f32 %v459, 0.0
  %v585 = vmax.f32 %v497, 0.0
  %v586 = vmax.f32 %v535, 0.0
  %v587 = vmax.f32 %v573, 0.0
  %v588 = vmax.f32 %v462, 0.0
  %v589 = vmax.f32 %v500, 0.0
  %v590 = vmax.f32 %v538, 0.0
  %v591 = vmax.f32 %v576, 0.0
  %v592 = vmax.f32 %v464, 0.0
  %v593 = vmax.f32 %v502, 0.0
  %v594 = vmax.f32 %v540, 0.0
  %v595 = vmax.f32 %v578, 0.0
  %596 = vst [vmem:[#allocation2] sm:$0xff] %v580
  %597 = vst [vmem:[#allocation2 + $0x8] sm:$0xff] %v584
  %598 = vst [vmem:[#allocation2 + $0x10] sm:$0xff] %v588
  %599 = vst [vmem:[#allocation2 + $0x18] sm:$0xff] %v592
  %600 = vst [vmem:[#allocation2 + $0x20] sm:$0xff] %v581
  %601 = vst [vmem:[#allocation2 + $0x28] sm:$0xff] %v585
  %602 = vst [vmem:[#allocation2 + $0x30] sm:$0xff] %v589
  %603 = vst [vmem:[#allocation2 + $0x38] sm:$0xff] %v593
  %604 = vst [vmem:[#allocation2 + $0x40] sm:$0xff] %v582
  %605 = vst [vmem:[#allocation2 + $0x48] sm:$0xff] %v586
  %606 = vst [vmem:[#allocation2 + $0x50] sm:$0xff] %v590
  %607 = vst [vmem:[#allocation2 + $0x58] sm:$0xff] %v594
  %608 = vst [vmem:[#allocation2 + $0x60] sm:$0xff] %v583
  %609 = vst [vmem:[#allocation2 + $0x68] sm:$0xff] %v587
  %610 = vst [vmem:[#allocation2 + $0x70] sm:$0xff] %v591
  %611 = vst [vmem:[#allocation2 + $0x78] sm:$0xff] %v595
  %v612 = vld [vmem:[#allocation2] sm:$0xff]
  %v613 = vld [vmem:[#allocation2 + $0x8] sm:$0xff]
  %v614 = vld [vmem:[#allocation2 + $0x10] sm:$0xff]
  %v615 = vld [vmem:[#allocation2 + $0x18] sm:$0xff]
  %v616 = vld [vmem:[#allocation2 + $0x20] sm:$0xff]
  %v617 = vld [vmem:[#allocation2 + $0x28] sm:$0xff]
  %v618 = vld [vmem:[#allocation2 + $0x30] sm:$0xff]
  %v619 = vld [vmem:[#allocation2 + $0x38] sm:$0xff]
  %v620 = vld [vmem:[#allocation2 + $0x40] sm:$0xff]
  %v621 = vld [vmem:[#allocation2 + $0x48] sm:$0xff]
  %v622 = vld [vmem:[#allocation2 + $0x50] sm:$0xff]
  %v623 = vld [vmem:[#allocation2 + $0x58] sm:$0xff]
  %v624 = vld [vmem:[#allocation2 + $0x60] sm:$0xff]
  %v625 = vld [vmem:[#allocation2 + $0x68] sm:$0xff]
  %v626 = vld [vmem:[#allocation2 + $0x70] sm:$0xff]
  %v627 = vld [vmem:[#allocation2 + $0x78] sm:$0xff]
  %v628 = vadd.f32 %v612, %v613
  %v629 = vadd.f32 %v628, %v614
  %v630 = vadd.f32 %v629, %v615
  %v631 = vadd.f32 %v630, %v616
  %v632 = vadd.f32 %v631, %v617
  %v633 = vadd.f32 %v632, %v618
  %v634 = vadd.f32 %v633, %v619
  %v635 = vadd.f32 %v634, %v620
  %v636 = vadd.f32 %v635, %v621
  %v637 = vadd.f32 %v636, %v622
  %v638 = vadd.f32 %v637, %v623
  %v639 = vadd.f32 %v638, %v624
  %v640 = vadd.f32 %v639, %v625
  %v641 = vadd.f32 %v640, %v626
  %v642 = vadd.f32 %v641, %v627
  %v643 = vrot.slane %v642, 4
  %v644 = vadd.f32 %v642, %v643
  %v645 = vrot.slane %v644, 2
  %v646 = vadd.f32 %v644, %v645
  %v647 = vrot.slane %v646, 1
  %v648 = vadd.f32 %v646, %v647
  %v649 = vmul.f32 %v648, 0.0078125
  %v650 = vsub.f32 %v612, %v649
  %v651 = vsub.f32 %v613, %v649
  %v652 = vsub.f32 %v614, %v649
  %v653 = vsub.f32 %v615, %v649
  %v654 = vsub.f32 %v616, %v649
  %v655 = vsub.f32 %v617, %v649
  %v656 = vsub.f32 %v618, %v649
  %v657 = vsub.f32 %v619, %v649
  %v658 = vsub.f32 %v620, %v649
  %v659 = vsub.f32 %v621, %v649
  %v660 = vsub.f32 %v622, %v649
  %v661 = vsub.f32 %v623, %v649
  %v662 = vsub.f32 %v624, %v649
  %v663 = vsub.f32 %v625, %v649
  %v664 = vsub.f32 %v626, %v649
  %v665 = vsub.f32 %v627, %v649
  %v666 = vmul.f32 %v650, %v650
  %v667 = vmul.f32 %v651, %v651
  %v668 = vmul.f32 %v652, %v652
  %v669 = vmul.f32 %v653, %v653
  %v670 = vmul.f32 %v654, %v654
  %v671 = vmul.f32 %v655, %v655
  %v672 = vmul.f32 %v656, %v656
  %v673 = vmul.f32 %v657, %v657
  %v674 = vmul.f32 %v658, %v658
  %v675 = vmul.f32 %v659, %v659
  %v676 = vmul.f32 %v660, %v660
  %v677 = vmul.f32 %v661, %v661
  %v678 = vmul.f32 %v662, %v662
  %v679 = vmul.f32 %v663, %v663
  %v680 = vmul.f32 %v664, %v664
  %v681 = vmul.f32 %v665, %v665
  %v682 = vadd.f32 %v666, %v667
  %v683 = vadd.f32 %v682, %v668
  %v684 = vadd.f32 %v683, %v669
  %v685 = vadd.f32 %v684, %v670
  %v686 = vadd.f32 %v685, %v671
  %v687 = vadd.f32 %v686, %v672
  %v688 = vadd.f32 %v687, %v673
  %v689 = vadd.f32 %v688, %v674
  %v690 = vadd.f32 %v689, %v675
  %v691 = vadd.f32 %v690, %v676
  %v692 = vadd.f32 %v691, %v677
  %v693 = vadd.f32 %v692, %v678
  %v694 = vadd.f32 %v693, %v679
  %v695 = vadd.f32 %v694, %v680
  %v696 = vadd.f32 %v695, %v681
  %v697 = vrot.slane %v696, 4
  %v698 = vadd.f32 %v696, %v697
  %v699 = vrot.slane %v698, 2
  %v700 = vadd.f32 %v698, %v699
  %v701 = vrot.slane %v700, 1
  %v702 = vadd.f32 %v700, %v701
  %v703 = vmul.f32 %v702, 0.0078125
  %v704 = vld [vmem:[%s2] sm:$0x1]
  %v705 = vadd.f32 %v703, 1e-05
  %v706 = vrsqrt.pop %v705
  %v707 = vmul.f32 %v706, %v705
  %v708 = vmul.f32 %v707, %v706
  %v709 = vmul.f32 0.5, %v708
  %v710 = vsub.f32 1.5, %v709
  %v711 = vmul.f32 %v706, %v710
  %vm712 = vweird.f32 %v705
  %vm713 = vweird.f32 %v706
  %vm714 = vmor %vm712, %vm713
  %v715 = vsel %vm714, %v706, %v711
  %v716 = vmul.f32 %v704, %v715
  %v717 = vld [vmem:[%s3] sm:$0x1]
  %v718 = vmul.f32 %v649, %v716
  %v719 = vsub.f32 %v717, %v718
  %v721 = vperm.slane %v716, 0
  %v723 = vmul.f32 %v612, %v721
  %v724 = vmul.f32 %v613, %v721
  %v725 = vmul.f32 %v614, %v721
  %v726 = vmul.f32 %v615, %v721
  %v727 = vmul.f32 %v616, %v721
  %v728 = vmul.f32 %v617, %v721
  %v729 = vmul.f32 %v618, %v721
  %v730 = vmul.f32 %v619, %v721
  %v731 = vmul.f32 %v620, %v721
  %v732 = vmul.f32 %v621, %v721
  %v733 = vmul.f32 %v622, %v721
  %v734 = vmul.f32 %v623, %v721
  %v735 = vmul.f32 %v624, %v721
  %v736 = vmul.f32 %v625, %v721
  %v737 = vmul.f32 %v626, %v721
  %v738 = vmul.f32 %v627, %v721
  %v740 = vperm.slane %v719, 0
  %v742 = vadd.f32 %v723, %v740
  %v743 = vadd.f32 %v724, %v740
  %v744 = vadd.f32 %v725, %v740
  %v745 = vadd.f32 %v726, %v740
  %v746 = vadd.f32 %v727, %v740
  %v747 = vadd.f32 %v728, %v740
  %v748 = vadd.f32 %v729, %v740
  %v749 = vadd.f32 %v730, %v740
  %v750 = vadd.f32 %v731, %v740
  %v751 = vadd.f32 %v732, %v740
  %v752 = vadd.f32 %v733, %v740
  %v753 = vadd.f32 %v734, %v740
  %v754 = vadd.f32 %v735, %v740
  %v755 = vadd.f32 %v736, %v740
  %v756 = vadd.f32 %v737, %v740
  %v757 = vadd.f32 %v738, %v740
  %758 = vst [vmem:[#allocation2] sm:$0xff] %v742
  %759 = vst [vmem:[#allocation2 + $0x8] sm:$0xff] %v743
  %760 = vst [vmem:[#allocation2 + $0x10] sm:$0xff] %v744
  %761 = vst [vmem:[#allocation2 + $0x18] sm:$0xff] %v745
  %762 = vst [vmem:[#allocation2 + $0x20] sm:$0xff] %v746
  %763 = vst [vmem:[#allocation2 + $0x28] sm:$0xff] %v747
  %764 = vst [vmem:[#allocation2 + $0x30] sm:$0xff] %v748
  %765 = vst [vmem:[#allocation2 + $0x38] sm:$0xff] %v749
  %766 = vst [vmem:[#allocation2 + $0x40] sm:$0xff] %v750
  %767 = vst [vmem:[#allocation2 + $0x48] sm:$0xff] %v751
  %768 = vst [vmem:[#allocation2 + $0x50] sm:$0xff] %v752
  %769 = vst [vmem:[#allocation2 + $0x58] sm:$0xff] %v753
  %770 = vst [vmem:[#allocation2 + $0x60] sm:$0xff] %v754
  %771 = vst [vmem:[#allocation2 + $0x68] sm:$0xff] %v755
  %772 = vst [vmem:[#allocation2 + $0x70] sm:$0xff] %v756
  %773 = vst [vmem:[#allocation2 + $0x78] sm:$0xff] %v757
  %v774 = vld [vmem:[#allocation2] sm:$0xff]
  %v775 = vld [vmem:[#allocation2 + $0x8] sm:$0xff]
  %v776 = vld [vmem:[#allocation2 + $0x10] sm:$0xff]
  %v777 = vld [vmem:[#allocation2 + $0x18] sm:$0xff]
  %v778 = vld [vmem:[#allocation2 + $0x20] sm:$0xff]
  %v779 = vld [vmem:[#allocation2 + $0x28] sm:$0xff]
  %v780 = vld [vmem:[#allocation2 + $0x30] sm:$0xff]
  %v781 = vld [vmem:[#allocation2 + $0x38] sm:$0xff]
  %v782 = vld [vmem:[#allocation2 + $0x40] sm:$0xff]
  %v783 = vld [vmem:[#allocation2 + $0x48] sm:$0xff]
  %v784 = vld [vmem:[#allocation2 + $0x50] sm:$0xff]
  %v785 = vld [vmem:[#allocation2 + $0x58] sm:$0xff]
  %v786 = vld [vmem:[#allocation2 + $0x60] sm:$0xff]
  %v787 = vld [vmem:[#allocation2 + $0x68] sm:$0xff]
  %v788 = vld [vmem:[#allocation2 + $0x70] sm:$0xff]
  %v789 = vld [vmem:[#allocation2 + $0x78] sm:$0xff]
  %v790 = vpack.c.bf16 %v775, %v774
  %v791 = vpack.c.bf16 %v777, %v776
  %v792 = vpack.c.bf16 %v779, %v778
  %v793 = vpack.c.bf16 %v781, %v780
  %v794 = vpack.c.bf16 %v783, %v782
  %v795 = vpack.c.bf16 %v785, %v784
  %v796 = vpack.c.bf16 %v787, %v786
  %v797 = vpack.c.bf16 %v789, %v788
  %v798 = vld [vmem:[%s4] sm:$0xff]
  %v799 = vld [vmem:[%s4 + $0x8] sm:$0xff]
  %v800 = vld [vmem:[%s4 + $0x10] sm:$0xff]
  %v801 = vld [vmem:[%s4 + $0x18] sm:$0xff]
  %v802 = vld [vmem:[%s4 + $0x20] sm:$0xff]
  %v803 = vld [vmem:[%s4 + $0x28] sm:$0xff]
  %v804 = vld [vmem:[%s4 + $0x30] sm:$0xff]
  %v805 = vld [vmem:[%s4 + $0x38] sm:$0xff]
  %v806 = vld [vmem:[%s4 + $0x40] sm:$0xff]
  %v807 = vld [vmem:[%s4 + $0x48] sm:$0xff]
  %v808 = vld [vmem:[%s4 + $0x50] sm:$0xff]
  %v809 = vld [vmem:[%s4 + $0x58] sm:$0xff]
  %v810 = vld [vmem:[%s4 + $0x60] sm:$0xff]
  %v811 = vld [vmem:[%s4 + $0x68] sm:$0xff]
  %v812 = vld [vmem:[%s4 + $0x70] sm:$0xff]
  %v813 = vld [vmem:[%s4 + $0x78] sm:$0xff]
  %v830 = vunpack.c.l.b16 %v798
  %v831 = vunpack.c.h.b16 %v798
  %v832 = vunpack.c.l.b16 %v799
  %v833 = vunpack.c.h.b16 %v799
  %v834 = vunpack.c.l.b16 %v800
  %v835 = vunpack.c.h.b16 %v800
  %v836 = vunpack.c.l.b16 %v801
  %v837 = vunpack.c.h.b16 %v801
  %v838 = vunpack.c.l.b16 %v802
  %v839 = vunpack.c.h.b16 %v802
  %v840 = vunpack.c.l.b16 %v803
  %v841 = vunpack.c.h.b16 %v803
  %v842 = vunpack.c.l.b16 %v804
  %v843 = vunpack.c.h.b16 %v804
  %v844 = vunpack.c.l.b16 %v805
  %v845 = vunpack.c.h.b16 %v805
  %v846 = vunpack.c.l.b16 %v806
  %v847 = vunpack.c.h.b16 %v806
  %v848 = vunpack.c.l.b16 %v807
  %v849 = vunpack.c.h.b16 %v807
  %v850 = vunpack.c.l.b16 %v808
  %v851 = vunpack.c.h.b16 %v808
  %v852 = vunpack.c.l.b16 %v809
  %v853 = vunpack.c.h.b16 %v809
  %v854 = vunpack.c.l.b16 %v810
  %v855 = vunpack.c.h.b16 %v810
  %v856 = vunpack.c.l.b16 %v811
  %v857 = vunpack.c.h.b16 %v811
  %v858 = vunpack.c.l.b16 %v812
  %v859 = vunpack.c.h.b16 %v812
  %v860 = vunpack.c.l.b16 %v813
  %v861 = vunpack.c.h.b16 %v813
  %v862 = vpack.c.b16 %v832, %v830
  %v863 = vpack.c.b16 %v833, %v831
  %v864 = vpack.c.b16 %v836, %v834
  %v865 = vpack.c.b16 %v837, %v835
  %v866 = vpack.c.b16 %v840, %v838
  %v867 = vpack.c.b16 %v841, %v839
  %v868 = vpack.c.b16 %v844, %v842
  %v869 = vpack.c.b16 %v845, %v843
  %v870 = vpack.c.b16 %v848, %v846
  %v871 = vpack.c.b16 %v849, %v847
  %v872 = vpack.c.b16 %v852, %v850
  %v873 = vpack.c.b16 %v853, %v851
  %v874 = vpack.c.b16 %v856, %v854
  %v875 = vpack.c.b16 %v857, %v855
  %v876 = vpack.c.b16 %v860, %v858
  %v877 = vpack.c.b16 %v861, %v859
  %894 = vmatpush.bf16.msra.mxu0 %v876
  %895 = vmatpush.bf16.msra.mxu0 %v874
  %896 = vmatpush.bf16.msra.mxu0 %v872
  %897 = vmatpush.bf16.msra.mxu0 %v870
  %898 = vmatpush.bf16.msra.mxu0 %v868
  %899 = vmatpush.bf16.msra.mxu0 %v866
  %900 = vmatpush.bf16.msra.mxu0 %v864
  %901 = vmatpush.bf16.msra.mxu0 %v862
  %902 = vmatmul.bf16.gmra.mxu0 %v790
  %v903 = vpop.f32.mrf.mxu0
  %v904 = vadd.f32 0.0, %v903
  %v905 = vpop.f32.mrf.mxu0
  %v906 = vadd.f32 0.0, %v905
  %907 = vmatmul.bf16.gmra.mxu0 %v791
  %v908 = vpop.f32.mrf.mxu0
  %v909 = vadd.f32 0.0, %v908
  %v910 = vpop.f32.mrf.mxu0
  %v911 = vadd.f32 0.0, %v910
  %912 = vmatmul.bf16.gmra.mxu0 %v792
  %v913 = vpop.f32.mrf.mxu0
  %v914 = vadd.f32 0.0, %v913
  %v915 = vpop.f32.mrf.mxu0
  %v916 = vadd.f32 0.0, %v915
  %917 = vmatmul.bf16.gmra.mxu0 %v793
  %v918 = vpop.f32.mrf.mxu0
  %v919 = vadd.f32 0.0, %v918
  %v920 = vpop.f32.mrf.mxu0
  %v921 = vadd.f32 0.0, %v920
  %922 = vmatmul.bf16.gmra.mxu0 %v794
  %v923 = vpop.f32.mrf.mxu0
  %v924 = vadd.f32 0.0, %v923
  %v925 = vpop.f32.mrf.mxu0
  %v926 = vadd.f32 0.0, %v925
  %927 = vmatmul.bf16.gmra.mxu0 %v795
  %v928 = vpop.f32.mrf.mxu0
  %v929 = vadd.f32 0.0, %v928
  %v930 = vpop.f32.mrf.mxu0
  %v931 = vadd.f32 0.0, %v930
  %932 = vmatmul.bf16.gmra.mxu0 %v796
  %v933 = vpop.f32.mrf.mxu0
  %v934 = vadd.f32 0.0, %v933
  %v935 = vpop.f32.mrf.mxu0
  %v936 = vadd.f32 0.0, %v935
  %937 = vmatmul.bf16.gmra.mxu0 %v797
  %v938 = vpop.f32.mrf.mxu0
  %v939 = vadd.f32 0.0, %v938
  %v940 = vpop.f32.mrf.mxu0
  %v941 = vadd.f32 0.0, %v940
  %942 = vdwg.mxu0
  %943 = vmatpush.bf16.msra.mxu0 %v877
  %944 = vmatpush.bf16.msra.mxu0 %v875
  %945 = vmatpush.bf16.msra.mxu0 %v873
  %946 = vmatpush.bf16.msra.mxu0 %v871
  %947 = vmatpush.bf16.msra.mxu0 %v869
  %948 = vmatpush.bf16.msra.mxu0 %v867
  %949 = vmatpush.bf16.msra.mxu0 %v865
  %950 = vmatpush.bf16.msra.mxu0 %v863
  %951 = vmatmul.bf16.gmra.mxu0 %v790
  %v952 = vpop.f32.mrf.mxu0
  %v953 = vadd.f32 0.0, %v952
  %v954 = vpop.f32.mrf.mxu0
  %v955 = vadd.f32 0.0, %v954
  %956 = vmatmul.bf16.gmra.mxu0 %v791
  %v957 = vpop.f32.mrf.mxu0
  %v958 = vadd.f32 0.0, %v957
  %v959 = vpop.f32.mrf.mxu0
  %v960 = vadd.f32 0.0, %v959
  %961 = vmatmul.bf16.gmra.mxu0 %v792
  %v962 = vpop.f32.mrf.mxu0
  %v963 = vadd.f32 0.0, %v962
  %v964 = vpop.f32.mrf.mxu0
  %v965 = vadd.f32 0.0, %v964
  %966 = vmatmul.bf16.gmra.mxu0 %v793
  %v967 = vpop.f32.mrf.mxu0
  %v968 = vadd.f32 0.0, %v967
  %v969 = vpop.f32.mrf.mxu0
  %v970 = vadd.f32 0.0, %v969
  %971 = vmatmul.bf16.gmra.mxu0 %v794
  %v972 = vpop.f32.mrf.mxu0
  %v973 = vadd.f32 0.0, %v972
  %v974 = vpop.f32.mrf.mxu0
  %v975 = vadd.f32 0.0, %v974
  %976 = vmatmul.bf16.gmra.mxu0 %v795
  %v977 = vpop.f32.mrf.mxu0
  %v978 = vadd.f32 0.0, %v977
  %v979 = vpop.f32.mrf.mxu0
  %v980 = vadd.f32 0.0, %v979
  %981 = vmatmul.bf16.gmra.mxu0 %v796
  %v982 = vpop.f32.mrf.mxu0
  %v983 = vadd.f32 0.0, %v982
  %v984 = vpop.f32.mrf.mxu0
  %v985 = vadd.f32 0.0, %v984
  %986 = vmatmul.bf16.gmra.mxu0 %v797
  %v987 = vpop.f32.mrf.mxu0
  %v988 = vadd.f32 0.0, %v987
  %v989 = vpop.f32.mrf.mxu0
  %v990 = vadd.f32 0.0, %v989
  %991 = vdwg.mxu0
  %v992 = vmax.f32 %v904, 0.0
  %v993 = vmax.f32 %v953, 0.0
  %v994 = vmax.f32 %v906, 0.0
  %v995 = vmax.f32 %v955, 0.0
  %v996 = vmax.f32 %v909, 0.0
  %v997 = vmax.f32 %v958, 0.0
  %v998 = vmax.f32 %v911, 0.0
  %v999 = vmax.f32 %v960, 0.0
  %v1000 = vmax.f32 %v914, 0.0
  %v1001 = vmax.f32 %v963, 0.0
  %v1002 = vmax.f32 %v916, 0.0
  %v1003 = vmax.f32 %v965, 0.0
  %v1004 = vmax.f32 %v919, 0.0
  %v1005 = vmax.f32 %v968, 0.0
  %v1006 = vmax.f32 %v921, 0.0
  %v1007 = vmax.f32 %v970, 0.0
  %v1008 = vmax.f32 %v924, 0.0
  %v1009 = vmax.f32 %v973, 0.0
  %v1010 = vmax.f32 %v926, 0.0
  %v1011 = vmax.f32 %v975, 0.0
  %v1012 = vmax.f32 %v929, 0.0
  %v1013 = vmax.f32 %v978, 0.0
  %v1014 = vmax.f32 %v931, 0.0
  %v1015 = vmax.f32 %v980, 0.0
  %v1016 = vmax.f32 %v934, 0.0
  %v1017 = vmax.f32 %v983, 0.0
  %v1018 = vmax.f32 %v936, 0.0
  %v1019 = vmax.f32 %v985, 0.0
  %v1020 = vmax.f32 %v939, 0.0
  %v1021 = vmax.f32 %v988, 0.0
  %v1022 = vmax.f32 %v941, 0.0
  %v1023 = vmax.f32 %v990, 0.0
  %1024 = vst [vmem:[#allocation3] sm:$0xff] %v992
  %1025 = vst [vmem:[#allocation3 + $0x8] sm:$0xff] %v993
  %1026 = vst [vmem:[#allocation3 + $0x10] sm:$0xff] %v994
  %1027 = vst [vmem:[#allocation3 + $0x18] sm:$0xff] %v995
  %1028 = vst [vmem:[#allocation3 + $0x20] sm:$0xff] %v996
  %1029 = vst [vmem:[#allocation3 + $0x28] sm:$0xff] %v997
  %1030 = vst [vmem:[#allocation3 + $0x30] sm:$0xff] %v998
  %1031 = vst [vmem:[#allocation3 + $0x38] sm:$0xff] %v999
  %1032 = vst [vmem:[#allocation3 + $0x40] sm:$0xff] %v1000
  %1033 = vst [vmem:[#allocation3 + $0x48] sm:$0xff] %v1001
  %1034 = vst [vmem:[#allocation3 + $0x50] sm:$0xff] %v1002
  %1035 = vst [vmem:[#allocation3 + $0x58] sm:$0xff] %v1003
  %1036 = vst [vmem:[#allocation3 + $0x60] sm:$0xff] %v1004
  %1037 = vst [vmem:[#allocation3 + $0x68] sm:$0xff] %v1005
  %1038 = vst [vmem:[#allocation3 + $0x70] sm:$0xff] %v1006
  %1039 = vst [vmem:[#allocation3 + $0x78] sm:$0xff] %v1007
  %1040 = vst [vmem:[#allocation3 + $0x80] sm:$0xff] %v1008
  %1041 = vst [vmem:[#allocation3 + $0x88] sm:$0xff] %v1009
  %1042 = vst [vmem:[#allocation3 + $0x90] sm:$0xff] %v1010
  %1043 = vst [vmem:[#allocation3 + $0x98] sm:$0xff] %v1011
  %1044 = vst [vmem:[#allocation3 + $0xa0] sm:$0xff] %v1012
  %1045 = vst [vmem:[#allocation3 + $0xa8] sm:$0xff] %v1013
  %1046 = vst [vmem:[#allocation3 + $0xb0] sm:$0xff] %v1014
  %1047 = vst [vmem:[#allocation3 + $0xb8] sm:$0xff] %v1015
  %1048 = vst [vmem:[#allocation3 + $0xc0] sm:$0xff] %v1016
  %1049 = vst [vmem:[#allocation3 + $0xc8] sm:$0xff] %v1017
  %1050 = vst [vmem:[#allocation3 + $0xd0] sm:$0xff] %v1018
  %1051 = vst [vmem:[#allocation3 + $0xd8] sm:$0xff] %v1019
  %1052 = vst [vmem:[#allocation3 + $0xe0] sm:$0xff] %v1020
  %1053 = vst [vmem:[#allocation3 + $0xe8] sm:$0xff] %v1021
  %1054 = vst [vmem:[#allocation3 + $0xf0] sm:$0xff] %v1022
  %1055 = vst [vmem:[#allocation3 + $0xf8] sm:$0xff] %v1023
  %v1056 = vld [vmem:[#allocation3] sm:$0xff]
  %v1057 = vld [vmem:[#allocation3 + $0x8] sm:$0xff]
  %v1058 = vld [vmem:[#allocation3 + $0x10] sm:$0xff]
  %v1059 = vld [vmem:[#allocation3 + $0x18] sm:$0xff]
  %v1060 = vld [vmem:[#allocation3 + $0x20] sm:$0xff]
  %v1061 = vld [vmem:[#allocation3 + $0x28] sm:$0xff]
  %v1062 = vld [vmem:[#allocation3 + $0x30] sm:$0xff]
  %v1063 = vld [vmem:[#allocation3 + $0x38] sm:$0xff]
  %v1064 = vld [vmem:[#allocation3 + $0x40] sm:$0xff]
  %v1065 = vld [vmem:[#allocation3 + $0x48] sm:$0xff]
  %v1066 = vld [vmem:[#allocation3 + $0x50] sm:$0xff]
  %v1067 = vld [vmem:[#allocation3 + $0x58] sm:$0xff]
  %v1068 = vld [vmem:[#allocation3 + $0x60] sm:$0xff]
  %v1069 = vld [vmem:[#allocation3 + $0x68] sm:$0xff]
  %v1070 = vld [vmem:[#allocation3 + $0x70] sm:$0xff]
  %v1071 = vld [vmem:[#allocation3 + $0x78] sm:$0xff]
  %v1072 = vld [vmem:[#allocation3 + $0x80] sm:$0xff]
  %v1073 = vld [vmem:[#allocation3 + $0x88] sm:$0xff]
  %v1074 = vld [vmem:[#allocation3 + $0x90] sm:$0xff]
  %v1075 = vld [vmem:[#allocation3 + $0x98] sm:$0xff]
  %v1076 = vld [vmem:[#allocation3 + $0xa0] sm:$0xff]
  %v1077 = vld [vmem:[#allocation3 + $0xa8] sm:$0xff]
  %v1078 = vld [vmem:[#allocation3 + $0xb0] sm:$0xff]
  %v1079 = vld [vmem:[#allocation3 + $0xb8] sm:$0xff]
  %v1080 = vld [vmem:[#allocation3 + $0xc0] sm:$0xff]
  %v1081 = vld [vmem:[#allocation3 + $0xc8] sm:$0xff]
  %v1082 = vld [vmem:[#allocation3 + $0xd0] sm:$0xff]
  %v1083 = vld [vmem:[#allocation3 + $0xd8] sm:$0xff]
  %v1084 = vld [vmem:[#allocation3 + $0xe0] sm:$0xff]
  %v1085 = vld [vmem:[#allocation3 + $0xe8] sm:$0xff]
  %v1086 = vld [vmem:[#allocation3 + $0xf0] sm:$0xff]
  %v1087 = vld [vmem:[#allocation3 + $0xf8] sm:$0xff]
  %v1088 = vadd.f32 %v1056, %v1058
  %v1089 = vadd.f32 %v1088, %v1060
  %v1090 = vadd.f32 %v1089, %v1062
  %v1091 = vadd.f32 %v1090, %v1064
  %v1092 = vadd.f32 %v1091, %v1066
  %v1093 = vadd.f32 %v1092, %v1068
  %v1094 = vadd.f32 %v1093, %v1070
  %v1095 = vadd.f32 %v1094, %v1072
  %v1096 = vadd.f32 %v1095, %v1074
  %v1097 = vadd.f32 %v1096, %v1076
  %v1098 = vadd.f32 %v1097, %v1078
  %v1099 = vadd.f32 %v1098, %v1080
  %v1100 = vadd.f32 %v1099, %v1082
  %v1101 = vadd.f32 %v1100, %v1084
  %v1102 = vadd.f32 %v1101, %v1086
  %v1103 = vrot.slane %v1102, 4
  %v1104 = vadd.f32 %v1102, %v1103
  %v1105 = vrot.slane %v1104, 2
  %v1106 = vadd.f32 %v1104, %v1105
  %v1107 = vrot.slane %v1106, 1
  %v1108 = vadd.f32 %v1106, %v1107
  %v1109 = vadd.f32 %v1057, %v1059
  %v1110 = vadd.f32 %v1109, %v1061
  %v1111 = vadd.f32 %v1110, %v1063
  %v1112 = vadd.f32 %v1111, %v1065
  %v1113 = vadd.f32 %v1112, %v1067
  %v1114 = vadd.f32 %v1113, %v1069
  %v1115 = vadd.f32 %v1114, %v1071
  %v1116 = vadd.f32 %v1115, %v1073
  %v1117 = vadd.f32 %v1116, %v1075
  %v1118 = vadd.f32 %v1117, %v1077
  %v1119 = vadd.f32 %v1118, %v1079
  %v1120 = vadd.f32 %v1119, %v1081
  %v1121 = vadd.f32 %v1120, %v1083
  %v1122 = vadd.f32 %v1121, %v1085
  %v1123 = vadd.f32 %v1122, %v1087
  %v1124 = vrot.slane %v1123, 4
  %v1125 = vadd.f32 %v1123, %v1124
  %v1126 = vrot.slane %v1125, 2
  %v1127 = vadd.f32 %v1125, %v1126
  %v1128 = vrot.slane %v1127, 1
  %v1129 = vadd.f32 %v1127, %v1128
  %1130 = vrot.lane.b32.xlu0 %v1108, 64
  %v1131 = vpop.permute.xlu0 %1130
  %1132 = vrot.lane.b32.xlu0 %v1129, 64
  %v1133 = vpop.permute.xlu0 %1132
  %v1134 = vlaneseq
  %v1135 = vand.u32 %v1134, 127
  %vm1136 = vcmp.lt.s32.totalorder %v1135, 64
  %v1137 = vsel %vm1136, %v1131, %v1133
  %v1138 = vsel %vm1136, %v1133, %v1131
  %v1139 = vadd.f32 %v1108, %v1138
  %v1140 = vadd.f32 %v1129, %v1137
  %v1141 = vadd.f32 %v1139, %v1129
  %v1142 = vadd.f32 %v1140, %v1108
  %v1143 = vadd.f32 %v1141, %v1137
  %v1144 = vadd.f32 %v1142, %v1138
  %v1145 = vmul.f32 %v1143, 0.001953125
  %v1146 = vmul.f32 %v1144, 0.001953125
  %v1147 = vperm.slane %v1145, 0
  %v1148 = vperm.slane %v1146, 0
  %v1149 = vsub.f32 %v1056, %v1147
  %v1150 = vsub.f32 %v1057, %v1148
  %v1151 = vsub.f32 %v1058, %v1147
  %v1152 = vsub.f32 %v1059, %v1148
  %v1153 = vsub.f32 %v1060, %v1147
  %v1154 = vsub.f32 %v1061, %v1148
  %v1155 = vsub.f32 %v1062, %v1147
  %v1156 = vsub.f32 %v1063, %v1148
  %v1157 = vsub.f32 %v1064, %v1147
  %v1158 = vsub.f32 %v1065, %v1148
  %v1159 = vsub.f32 %v1066, %v1147
  %v1160 = vsub.f32 %v1067, %v1148
  %v1161 = vsub.f32 %v1068, %v1147
  %v1162 = vsub.f32 %v1069, %v1148
  %v1163 = vsub.f32 %v1070, %v1147
  %v1164 = vsub.f32 %v1071, %v1148
  %v1165 = vsub.f32 %v1072, %v1147
  %v1166 = vsub.f32 %v1073, %v1148
  %v1167 = vsub.f32 %v1074, %v1147
  %v1168 = vsub.f32 %v1075, %v1148
  %v1169 = vsub.f32 %v1076, %v1147
  %v1170 = vsub.f32 %v1077, %v1148
  %v1171 = vsub.f32 %v1078, %v1147
  %v1172 = vsub.f32 %v1079, %v1148
  %v1173 = vsub.f32 %v1080, %v1147
  %v1174 = vsub.f32 %v1081, %v1148
  %v1175 = vsub.f32 %v1082, %v1147
  %v1176 = vsub.f32 %v1083, %v1148
  %v1177 = vsub.f32 %v1084, %v1147
  %v1178 = vsub.f32 %v1085, %v1148
  %v1179 = vsub.f32 %v1086, %v1147
  %v1180 = vsub.f32 %v1087, %v1148
  %v1181 = vmul.f32 %v1149, %v1149
  %v1182 = vmul.f32 %v1150, %v1150
  %v1183 = vmul.f32 %v1151, %v1151
  %v1184 = vmul.f32 %v1152, %v1152
  %v1185 = vmul.f32 %v1153, %v1153
  %v1186 = vmul.f32 %v1154, %v1154
  %v1187 = vmul.f32 %v1155, %v1155
  %v1188 = vmul.f32 %v1156, %v1156
  %v1189 = vmul.f32 %v1157, %v1157
  %v1190 = vmul.f32 %v1158, %v1158
  %v1191 = vmul.f32 %v1159, %v1159
  %v1192 = vmul.f32 %v1160, %v1160
  %v1193 = vmul.f32 %v1161, %v1161
  %v1194 = vmul.f32 %v1162, %v1162
  %v1195 = vmul.f32 %v1163, %v1163
  %v1196 = vmul.f32 %v1164, %v1164
  %v1197 = vmul.f32 %v1165, %v1165
  %v1198 = vmul.f32 %v1166, %v1166
  %v1199 = vmul.f32 %v1167, %v1167
  %v1200 = vmul.f32 %v1168, %v1168
  %v1201 = vmul.f32 %v1169, %v1169
  %v1202 = vmul.f32 %v1170, %v1170
  %v1203 = vmul.f32 %v1171, %v1171
  %v1204 = vmul.f32 %v1172, %v1172
  %v1205 = vmul.f32 %v1173, %v1173
  %v1206 = vmul.f32 %v1174, %v1174
  %v1207 = vmul.f32 %v1175, %v1175
  %v1208 = vmul.f32 %v1176, %v1176
  %v1209 = vmul.f32 %v1177, %v1177
  %v1210 = vmul.f32 %v1178, %v1178
  %v1211 = vmul.f32 %v1179, %v1179
  %v1212 = vmul.f32 %v1180, %v1180
  %v1213 = vadd.f32 %v1181, %v1183
  %v1214 = vadd.f32 %v1213, %v1185
  %v1215 = vadd.f32 %v1214, %v1187
  %v1216 = vadd.f32 %v1215, %v1189
  %v1217 = vadd.f32 %v1216, %v1191
  %v1218 = vadd.f32 %v1217, %v1193
  %v1219 = vadd.f32 %v1218, %v1195
  %v1220 = vadd.f32 %v1219, %v1197
  %v1221 = vadd.f32 %v1220, %v1199
  %v1222 = vadd.f32 %v1221, %v1201
  %v1223 = vadd.f32 %v1222, %v1203
  %v1224 = vadd.f32 %v1223, %v1205
  %v1225 = vadd.f32 %v1224, %v1207
  %v1226 = vadd.f32 %v1225, %v1209
  %v1227 = vadd.f32 %v1226, %v1211
  %v1228 = vrot.slane %v1227, 4
  %v1229 = vadd.f32 %v1227, %v1228
  %v1230 = vrot.slane %v1229, 2
  %v1231 = vadd.f32 %v1229, %v1230
  %v1232 = vrot.slane %v1231, 1
  %v1233 = vadd.f32 %v1231, %v1232
  %v1234 = vadd.f32 %v1182, %v1184
  %v1235 = vadd.f32 %v1234, %v1186
  %v1236 = vadd.f32 %v1235, %v1188
  %v1237 = vadd.f32 %v1236, %v1190
  %v1238 = vadd.f32 %v1237, %v1192
  %v1239 = vadd.f32 %v1238, %v1194
  %v1240 = vadd.f32 %v1239, %v1196
  %v1241 = vadd.f32 %v1240, %v1198
  %v1242 = vadd.f32 %v1241, %v1200
  %v1243 = vadd.f32 %v1242, %v1202
  %v1244 = vadd.f32 %v1243, %v1204
  %v1245 = vadd.f32 %v1244, %v1206
  %v1246 = vadd.f32 %v1245, %v1208
  %v1247 = vadd.f32 %v1246, %v1210
  %v1248 = vadd.f32 %v1247, %v1212
  %v1249 = vrot.slane %v1248, 4
  %v1250 = vadd.f32 %v1248, %v1249
  %v1251 = vrot.slane %v1250, 2
  %v1252 = vadd.f32 %v1250, %v1251
  %v1253 = vrot.slane %v1252, 1
  %v1254 = vadd.f32 %v1252, %v1253
  %1255 = vrot.lane.b32.xlu0 %v1233, 64
  %v1256 = vpop.permute.xlu0 %1255
  %1257 = vrot.lane.b32.xlu0 %v1254, 64
  %v1258 = vpop.permute.xlu0 %1257
  %v1259 = vsel %vm1136, %v1256, %v1258
  %v1260 = vsel %vm1136, %v1258, %v1256
  %v1261 = vadd.f32 %v1233, %v1260
  %v1262 = vadd.f32 %v1254, %v1259
  %v1263 = vadd.f32 %v1261, %v1254
  %v1264 = vadd.f32 %v1262, %v1233
  %v1265 = vadd.f32 %v1263, %v1259
  %v1266 = vadd.f32 %v1264, %v1260
  %v1267 = vmul.f32 %v1265, 0.001953125
  %v1268 = vmul.f32 %v1266, 0.001953125
  %v1269 = vld [vmem:[%s5] sm:$0x3]
  %v1270 = vadd.f32 %v1267, 1e-05
  %v1271 = vadd.f32 %v1268, 1e-05
  %v1272 = vrsqrt.pop %v1270
  %v1273 = vmul.f32 %v1272, %v1270
  %v1274 = vmul.f32 %v1273, %v1272
  %v1275 = vmul.f32 0.5, %v1274
  %v1276 = vsub.f32 1.5, %v1275
  %v1277 = vmul.f32 %v1272, %v1276
  %vm1278 = vweird.f32 %v1270
  %vm1279 = vweird.f32 %v1272
  %vm1280 = vmor %vm1278, %vm1279
  %v1281 = vsel %vm1280, %v1272, %v1277
  %v1282 = vrsqrt.pop %v1271
  %v1283 = vmul.f32 %v1282, %v1271
  %v1284 = vmul.f32 %v1283, %v1282
  %v1285 = vmul.f32 0.5, %v1284
  %v1286 = vsub.f32 1.5, %v1285
  %v1287 = vmul.f32 %v1282, %v1286
  %vm1288 = vweird.f32 %v1271
  %vm1289 = vweird.f32 %v1282
  %vm1290 = vmor %vm1288, %vm1289
  %v1291 = vsel %vm1290, %v1282, %v1287
  %v1294 = vrot.slane %v1291, 7
  %vm1295 = vcmask 1040384
  %v1296 = vsel %vm1295, %v1281, %v1294
  %v1298 = vmul.f32 %v1269, %v1296
  %v1299 = vld [vmem:[%s6] sm:$0x3]
  %v1301 = vperm.slane %v1298, 0
  %v1302 = vperm.slane %v1298, 1
  %v1305 = vmul.f32 %v1145, %v1301
  %v1306 = vmul.f32 %v1146, %v1302
  %v1309 = vrot.slane %v1306, 7
  %v1310 = vsel %vm1295, %v1305, %v1309
  %v1312 = vsub.f32 %v1299, %v1310
  %v1313 = vmul.f32 %v1056, %v1301
  %v1314 = vmul.f32 %v1057, %v1302
  %v1315 = vmul.f32 %v1058, %v1301
  %v1316 = vmul.f32 %v1059, %v1302
  %v1317 = vmul.f32 %v1060, %v1301
  %v1318 = vmul.f32 %v1061, %v1302
  %v1319 = vmul.f32 %v1062, %v1301
  %v1320 = vmul.f32 %v1063, %v1302
  %v1321 = vmul.f32 %v1064, %v1301
  %v1322 = vmul.f32 %v1065, %v1302
  %v1323 = vmul.f32 %v1066, %v1301
  %v1324 = vmul.f32 %v1067, %v1302
  %v1325 = vmul.f32 %v1068, %v1301
  %v1326 = vmul.f32 %v1069, %v1302
  %v1327 = vmul.f32 %v1070, %v1301
  %v1328 = vmul.f32 %v1071, %v1302
  %v1329 = vmul.f32 %v1072, %v1301
  %v1330 = vmul.f32 %v1073, %v1302
  %v1331 = vmul.f32 %v1074, %v1301
  %v1332 = vmul.f32 %v1075, %v1302
  %v1333 = vmul.f32 %v1076, %v1301
  %v1334 = vmul.f32 %v1077, %v1302
  %v1335 = vmul.f32 %v1078, %v1301
  %v1336 = vmul.f32 %v1079, %v1302
  %v1337 = vmul.f32 %v1080, %v1301
  %v1338 = vmul.f32 %v1081, %v1302
  %v1339 = vmul.f32 %v1082, %v1301
  %v1340 = vmul.f32 %v1083, %v1302
  %v1341 = vmul.f32 %v1084, %v1301
  %v1342 = vmul.f32 %v1085, %v1302
  %v1343 = vmul.f32 %v1086, %v1301
  %v1344 = vmul.f32 %v1087, %v1302
  %v1346 = vperm.slane %v1312, 0
  %v1347 = vperm.slane %v1312, 1
  %v1350 = vadd.f32 %v1313, %v1346
  %v1351 = vadd.f32 %v1314, %v1347
  %v1352 = vadd.f32 %v1315, %v1346
  %v1353 = vadd.f32 %v1316, %v1347
  %v1354 = vadd.f32 %v1317, %v1346
  %v1355 = vadd.f32 %v1318, %v1347
  %v1356 = vadd.f32 %v1319, %v1346
  %v1357 = vadd.f32 %v1320, %v1347
  %v1358 = vadd.f32 %v1321, %v1346
  %v1359 = vadd.f32 %v1322, %v1347
  %v1360 = vadd.f32 %v1323, %v1346
  %v1361 = vadd.f32 %v1324, %v1347
  %v1362 = vadd.f32 %v1325, %v1346
  %v1363 = vadd.f32 %v1326, %v1347
  %v1364 = vadd.f32 %v1327, %v1346
  %v1365 = vadd.f32 %v1328, %v1347
  %v1366 = vadd.f32 %v1329, %v1346
  %v1367 = vadd.f32 %v1330, %v1347
  %v1368 = vadd.f32 %v1331, %v1346
  %v1369 = vadd.f32 %v1332, %v1347
  %v1370 = vadd.f32 %v1333, %v1346
  %v1371 = vadd.f32 %v1334, %v1347
  %v1372 = vadd.f32 %v1335, %v1346
  %v1373 = vadd.f32 %v1336, %v1347
  %v1374 = vadd.f32 %v1337, %v1346
  %v1375 = vadd.f32 %v1338, %v1347
  %v1376 = vadd.f32 %v1339, %v1346
  %v1377 = vadd.f32 %v1340, %v1347
  %v1378 = vadd.f32 %v1341, %v1346
  %v1379 = vadd.f32 %v1342, %v1347
  %v1380 = vadd.f32 %v1343, %v1346
  %v1381 = vadd.f32 %v1344, %v1347
  %1382 = vst [vmem:[#allocation3] sm:$0xff] %v1350
  %1383 = vst [vmem:[#allocation3 + $0x8] sm:$0xff] %v1351
  %1384 = vst [vmem:[#allocation3 + $0x10] sm:$0xff] %v1352
  %1385 = vst [vmem:[#allocation3 + $0x18] sm:$0xff] %v1353
  %1386 = vst [vmem:[#allocation3 + $0x20] sm:$0xff] %v1354
  %1387 = vst [vmem:[#allocation3 + $0x28] sm:$0xff] %v1355
  %1388 = vst [vmem:[#allocation3 + $0x30] sm:$0xff] %v1356
  %1389 = vst [vmem:[#allocation3 + $0x38] sm:$0xff] %v1357
  %1390 = vst [vmem:[#allocation3 + $0x40] sm:$0xff] %v1358
  %1391 = vst [vmem:[#allocation3 + $0x48] sm:$0xff] %v1359
  %1392 = vst [vmem:[#allocation3 + $0x50] sm:$0xff] %v1360
  %1393 = vst [vmem:[#allocation3 + $0x58] sm:$0xff] %v1361
  %1394 = vst [vmem:[#allocation3 + $0x60] sm:$0xff] %v1362
  %1395 = vst [vmem:[#allocation3 + $0x68] sm:$0xff] %v1363
  %1396 = vst [vmem:[#allocation3 + $0x70] sm:$0xff] %v1364
  %1397 = vst [vmem:[#allocation3 + $0x78] sm:$0xff] %v1365
  %1398 = vst [vmem:[#allocation3 + $0x80] sm:$0xff] %v1366
  %1399 = vst [vmem:[#allocation3 + $0x88] sm:$0xff] %v1367
  %1400 = vst [vmem:[#allocation3 + $0x90] sm:$0xff] %v1368
  %1401 = vst [vmem:[#allocation3 + $0x98] sm:$0xff] %v1369
  %1402 = vst [vmem:[#allocation3 + $0xa0] sm:$0xff] %v1370
  %1403 = vst [vmem:[#allocation3 + $0xa8] sm:$0xff] %v1371
  %1404 = vst [vmem:[#allocation3 + $0xb0] sm:$0xff] %v1372
  %1405 = vst [vmem:[#allocation3 + $0xb8] sm:$0xff] %v1373
  %1406 = vst [vmem:[#allocation3 + $0xc0] sm:$0xff] %v1374
  %1407 = vst [vmem:[#allocation3 + $0xc8] sm:$0xff] %v1375
  %1408 = vst [vmem:[#allocation3 + $0xd0] sm:$0xff] %v1376
  %1409 = vst [vmem:[#allocation3 + $0xd8] sm:$0xff] %v1377
  %1410 = vst [vmem:[#allocation3 + $0xe0] sm:$0xff] %v1378
  %1411 = vst [vmem:[#allocation3 + $0xe8] sm:$0xff] %v1379
  %1412 = vst [vmem:[#allocation3 + $0xf0] sm:$0xff] %v1380
  %1413 = vst [vmem:[#allocation3 + $0xf8] sm:$0xff] %v1381
  %v1414 = vld [vmem:[#allocation3] sm:$0xff]
  %v1415 = vld [vmem:[#allocation3 + $0x8] sm:$0xff]
  %v1416 = vld [vmem:[#allocation3 + $0x10] sm:$0xff]
  %v1417 = vld [vmem:[#allocation3 + $0x18] sm:$0xff]
  %v1418 = vld [vmem:[#allocation3 + $0x20] sm:$0xff]
  %v1419 = vld [vmem:[#allocation3 + $0x28] sm:$0xff]
  %v1420 = vld [vmem:[#allocation3 + $0x30] sm:$0xff]
  %v1421 = vld [vmem:[#allocation3 + $0x38] sm:$0xff]
  %v1422 = vld [vmem:[#allocation3 + $0x40] sm:$0xff]
  %v1423 = vld [vmem:[#allocation3 + $0x48] sm:$0xff]
  %v1424 = vld [vmem:[#allocation3 + $0x50] sm:$0xff]
  %v1425 = vld [vmem:[#allocation3 + $0x58] sm:$0xff]
  %v1426 = vld [vmem:[#allocation3 + $0x60] sm:$0xff]
  %v1427 = vld [vmem:[#allocation3 + $0x68] sm:$0xff]
  %v1428 = vld [vmem:[#allocation3 + $0x70] sm:$0xff]
  %v1429 = vld [vmem:[#allocation3 + $0x78] sm:$0xff]
  %v1430 = vld [vmem:[#allocation3 + $0x80] sm:$0xff]
  %v1431 = vld [vmem:[#allocation3 + $0x88] sm:$0xff]
  %v1432 = vld [vmem:[#allocation3 + $0x90] sm:$0xff]
  %v1433 = vld [vmem:[#allocation3 + $0x98] sm:$0xff]
  %v1434 = vld [vmem:[#allocation3 + $0xa0] sm:$0xff]
  %v1435 = vld [vmem:[#allocation3 + $0xa8] sm:$0xff]
  %v1436 = vld [vmem:[#allocation3 + $0xb0] sm:$0xff]
  %v1437 = vld [vmem:[#allocation3 + $0xb8] sm:$0xff]
  %v1438 = vld [vmem:[#allocation3 + $0xc0] sm:$0xff]
  %v1439 = vld [vmem:[#allocation3 + $0xc8] sm:$0xff]
  %v1440 = vld [vmem:[#allocation3 + $0xd0] sm:$0xff]
  %v1441 = vld [vmem:[#allocation3 + $0xd8] sm:$0xff]
  %v1442 = vld [vmem:[#allocation3 + $0xe0] sm:$0xff]
  %v1443 = vld [vmem:[#allocation3 + $0xe8] sm:$0xff]
  %v1444 = vld [vmem:[#allocation3 + $0xf0] sm:$0xff]
  %v1445 = vld [vmem:[#allocation3 + $0xf8] sm:$0xff]
  %v1446 = vpack.c.bf16 %v1416, %v1414
  %v1447 = vpack.c.bf16 %v1417, %v1415
  %v1448 = vpack.c.bf16 %v1420, %v1418
  %v1449 = vpack.c.bf16 %v1421, %v1419
  %v1450 = vpack.c.bf16 %v1424, %v1422
  %v1451 = vpack.c.bf16 %v1425, %v1423
  %v1452 = vpack.c.bf16 %v1428, %v1426
  %v1453 = vpack.c.bf16 %v1429, %v1427
  %v1454 = vpack.c.bf16 %v1432, %v1430
  %v1455 = vpack.c.bf16 %v1433, %v1431
  %v1456 = vpack.c.bf16 %v1436, %v1434
  %v1457 = vpack.c.bf16 %v1437, %v1435
  %v1458 = vpack.c.bf16 %v1440, %v1438
  %v1459 = vpack.c.bf16 %v1441, %v1439
  %v1460 = vpack.c.bf16 %v1444, %v1442
  %v1461 = vpack.c.bf16 %v1445, %v1443
  %v1462 = vld [vmem:[%s7] sm:$0xf]
  %v1463 = vld [vmem:[%s7 + $0x4] sm:$0xf]
  %v1464 = vld [vmem:[%s7 + $0x8] sm:$0xf]
  %v1465 = vld [vmem:[%s7 + $0xc] sm:$0xf]
  %v1466 = vld [vmem:[%s7 + $0x10] sm:$0xf]
  %v1467 = vld [vmem:[%s7 + $0x14] sm:$0xf]
  %v1468 = vld [vmem:[%s7 + $0x18] sm:$0xf]
  %v1469 = vld [vmem:[%s7 + $0x1c] sm:$0xf]
  %v1470 = vld [vmem:[%s7 + $0x20] sm:$0xf]
  %v1471 = vld [vmem:[%s7 + $0x24] sm:$0xf]
  %v1472 = vld [vmem:[%s7 + $0x28] sm:$0xf]
  %v1473 = vld [vmem:[%s7 + $0x2c] sm:$0xf]
  %v1474 = vld [vmem:[%s7 + $0x30] sm:$0xf]
  %v1475 = vld [vmem:[%s7 + $0x34] sm:$0xf]
  %v1476 = vld [vmem:[%s7 + $0x38] sm:$0xf]
  %v1477 = vld [vmem:[%s7 + $0x3c] sm:$0xf]
  %v1478 = vld [vmem:[%s7 + $0x40] sm:$0xf]
  %v1479 = vld [vmem:[%s7 + $0x44] sm:$0xf]
  %v1480 = vld [vmem:[%s7 + $0x48] sm:$0xf]
  %v1481 = vld [vmem:[%s7 + $0x4c] sm:$0xf]
  %v1482 = vld [vmem:[%s7 + $0x50] sm:$0xf]
  %v1483 = vld [vmem:[%s7 + $0x54] sm:$0xf]
  %v1484 = vld [vmem:[%s7 + $0x58] sm:$0xf]
  %v1485 = vld [vmem:[%s7 + $0x5c] sm:$0xf]
  %v1486 = vld [vmem:[%s7 + $0x60] sm:$0xf]
  %v1487 = vld [vmem:[%s7 + $0x64] sm:$0xf]
  %v1488 = vld [vmem:[%s7 + $0x68] sm:$0xf]
  %v1489 = vld [vmem:[%s7 + $0x6c] sm:$0xf]
  %v1490 = vld [vmem:[%s7 + $0x70] sm:$0xf]
  %v1491 = vld [vmem:[%s7 + $0x74] sm:$0xf]
  %v1492 = vld [vmem:[%s7 + $0x78] sm:$0xf]
  %v1493 = vld [vmem:[%s7 + $0x7c] sm:$0xf]
  %v1494 = vld [vmem:[%s8] sm:$0x1]
  %v1496 = vperm.slane %v1494, 0
  %v1530 = vunpack.c.l.b16 %v1462
  %v1531 = vunpack.c.l.b16 %v1463
  %v1532 = vunpack.c.l.b16 %v1464
  %v1533 = vunpack.c.l.b16 %v1465
  %v1534 = vunpack.c.l.b16 %v1466
  %v1535 = vunpack.c.l.b16 %v1467
  %v1536 = vunpack.c.l.b16 %v1468
  %v1537 = vunpack.c.l.b16 %v1469
  %v1538 = vunpack.c.l.b16 %v1470
  %v1539 = vunpack.c.l.b16 %v1471
  %v1540 = vunpack.c.l.b16 %v1472
  %v1541 = vunpack.c.l.b16 %v1473
  %v1542 = vunpack.c.l.b16 %v1474
  %v1543 = vunpack.c.l.b16 %v1475
  %v1544 = vunpack.c.l.b16 %v1476
  %v1545 = vunpack.c.l.b16 %v1477
  %v1546 = vunpack.c.l.b16 %v1478
  %v1547 = vunpack.c.l.b16 %v1479
  %v1548 = vunpack.c.l.b16 %v1480
  %v1549 = vunpack.c.l.b16 %v1481
  %v1550 = vunpack.c.l.b16 %v1482
  %v1551 = vunpack.c.l.b16 %v1483
  %v1552 = vunpack.c.l.b16 %v1484
  %v1553 = vunpack.c.l.b16 %v1485
  %v1554 = vunpack.c.l.b16 %v1486
  %v1555 = vunpack.c.l.b16 %v1487
  %v1556 = vunpack.c.l.b16 %v1488
  %v1557 = vunpack.c.l.b16 %v1489
  %v1558 = vunpack.c.l.b16 %v1490
  %v1559 = vunpack.c.l.b16 %v1491
  %v1560 = vunpack.c.l.b16 %v1492
  %v1561 = vunpack.c.l.b16 %v1493
  %v1562 = vpack.c.b16 %v1531, %v1530
  %v1563 = vpack.c.b16 %v1533, %v1532
  %v1564 = vpack.c.b16 %v1535, %v1534
  %v1565 = vpack.c.b16 %v1537, %v1536
  %v1566 = vpack.c.b16 %v1539, %v1538
  %v1567 = vpack.c.b16 %v1541, %v1540
  %v1568 = vpack.c.b16 %v1543, %v1542
  %v1569 = vpack.c.b16 %v1545, %v1544
  %v1570 = vpack.c.b16 %v1547, %v1546
  %v1571 = vpack.c.b16 %v1549, %v1548
  %v1572 = vpack.c.b16 %v1551, %v1550
  %v1573 = vpack.c.b16 %v1553, %v1552
  %v1574 = vpack.c.b16 %v1555, %v1554
  %v1575 = vpack.c.b16 %v1557, %v1556
  %v1576 = vpack.c.b16 %v1559, %v1558
  %v1577 = vpack.c.b16 %v1561, %v1560
  %1594 = vmatpush.bf16.msra.mxu0 %v1569
  %1595 = vmatpush.bf16.msra.mxu0 %v1568
  %1596 = vmatpush.bf16.msra.mxu0 %v1567
  %1597 = vmatpush.bf16.msra.mxu0 %v1566
  %1598 = vmatpush.bf16.msra.mxu0 %v1565
  %1599 = vmatpush.bf16.msra.mxu0 %v1564
  %1600 = vmatpush.bf16.msra.mxu0 %v1563
  %1601 = vmatpush.bf16.msra.mxu0 %v1562
  %1602 = vmatmul.bf16.gmra.mxu0 %v1446
  %v1603 = vpop.f32.mrf.mxu0
  %v1604 = vadd.f32 %v1496, %v1603
  %v1605 = vpop.f32.mrf.mxu0
  %v1606 = vadd.f32 %v1496, %v1605
  %1607 = vmatmul.bf16.gmra.mxu0 %v1448
  %v1608 = vpop.f32.mrf.mxu0
  %v1609 = vadd.f32 %v1496, %v1608
  %v1610 = vpop.f32.mrf.mxu0
  %v1611 = vadd.f32 %v1496, %v1610
  %1612 = vmatmul.bf16.gmra.mxu0 %v1450
  %v1613 = vpop.f32.mrf.mxu0
  %v1614 = vadd.f32 %v1496, %v1613
  %v1615 = vpop.f32.mrf.mxu0
  %v1616 = vadd.f32 %v1496, %v1615
  %1617 = vmatmul.bf16.gmra.mxu0 %v1452
  %v1618 = vpop.f32.mrf.mxu0
  %v1619 = vadd.f32 %v1496, %v1618
  %v1620 = vpop.f32.mrf.mxu0
  %v1621 = vadd.f32 %v1496, %v1620
  %1622 = vmatmul.bf16.gmra.mxu0 %v1454
  %v1623 = vpop.f32.mrf.mxu0
  %v1624 = vadd.f32 %v1496, %v1623
  %v1625 = vpop.f32.mrf.mxu0
  %v1626 = vadd.f32 %v1496, %v1625
  %1627 = vmatmul.bf16.gmra.mxu0 %v1456
  %v1628 = vpop.f32.mrf.mxu0
  %v1629 = vadd.f32 %v1496, %v1628
  %v1630 = vpop.f32.mrf.mxu0
  %v1631 = vadd.f32 %v1496, %v1630
  %1632 = vmatmul.bf16.gmra.mxu0 %v1458
  %v1633 = vpop.f32.mrf.mxu0
  %v1634 = vadd.f32 %v1496, %v1633
  %v1635 = vpop.f32.mrf.mxu0
  %v1636 = vadd.f32 %v1496, %v1635
  %1637 = vmatmul.bf16.gmra.mxu0 %v1460
  %v1638 = vpop.f32.mrf.mxu0
  %v1639 = vadd.f32 %v1496, %v1638
  %v1640 = vpop.f32.mrf.mxu0
  %v1641 = vadd.f32 %v1496, %v1640
  %1642 = vdwg.mxu0
  %1643 = vmatpush.bf16.msra.mxu0 %v1577
  %1644 = vmatpush.bf16.msra.mxu0 %v1576
  %1645 = vmatpush.bf16.msra.mxu0 %v1575
  %1646 = vmatpush.bf16.msra.mxu0 %v1574
  %1647 = vmatpush.bf16.msra.mxu0 %v1573
  %1648 = vmatpush.bf16.msra.mxu0 %v1572
  %1649 = vmatpush.bf16.msra.mxu0 %v1571
  %1650 = vmatpush.bf16.msra.mxu0 %v1570
  %1651 = vmatmul.bf16.gmra.mxu0 %v1447
  %v1652 = vpop.f32.mrf.mxu0
  %v1653 = vadd.f32 %v1604, %v1652
  %v1654 = vpop.f32.mrf.mxu0
  %v1655 = vadd.f32 %v1606, %v1654
  %1656 = vmatmul.bf16.gmra.mxu0 %v1449
  %v1657 = vpop.f32.mrf.mxu0
  %v1658 = vadd.f32 %v1609, %v1657
  %v1659 = vpop.f32.mrf.mxu0
  %v1660 = vadd.f32 %v1611, %v1659
  %1661 = vmatmul.bf16.gmra.mxu0 %v1451
  %v1662 = vpop.f32.mrf.mxu0
  %v1663 = vadd.f32 %v1614, %v1662
  %v1664 = vpop.f32.mrf.mxu0
  %v1665 = vadd.f32 %v1616, %v1664
  %1666 = vmatmul.bf16.gmra.mxu0 %v1453
  %v1667 = vpop.f32.mrf.mxu0
  %v1668 = vadd.f32 %v1619, %v1667
  %v1669 = vpop.f32.mrf.mxu0
  %v1670 = vadd.f32 %v1621, %v1669
  %1671 = vmatmul.bf16.gmra.mxu0 %v1455
  %v1672 = vpop.f32.mrf.mxu0
  %v1673 = vadd.f32 %v1624, %v1672
  %v1674 = vpop.f32.mrf.mxu0
  %v1675 = vadd.f32 %v1626, %v1674
  %1676 = vmatmul.bf16.gmra.mxu0 %v1457
  %v1677 = vpop.f32.mrf.mxu0
  %v1678 = vadd.f32 %v1629, %v1677
  %v1679 = vpop.f32.mrf.mxu0
  %v1680 = vadd.f32 %v1631, %v1679
  %1681 = vmatmul.bf16.gmra.mxu0 %v1459
  %v1682 = vpop.f32.mrf.mxu0
  %v1683 = vadd.f32 %v1634, %v1682
  %v1684 = vpop.f32.mrf.mxu0
  %v1685 = vadd.f32 %v1636, %v1684
  %1686 = vmatmul.bf16.gmra.mxu0 %v1461
  %v1687 = vpop.f32.mrf.mxu0
  %v1688 = vadd.f32 %v1639, %v1687
  %v1689 = vpop.f32.mrf.mxu0
  %v1690 = vadd.f32 %v1641, %v1689
  %1691 = vdwg.mxu0
  %v1692 = vtanh.pop %v1653
  %v1693 = vtanh.pop %v1655
  %v1694 = vtanh.pop %v1658
  %v1695 = vtanh.pop %v1660
  %v1696 = vtanh.pop %v1663
  %v1697 = vtanh.pop %v1665
  %v1698 = vtanh.pop %v1668
  %v1699 = vtanh.pop %v1670
  %v1700 = vtanh.pop %v1673
  %v1701 = vtanh.pop %v1675
  %v1702 = vtanh.pop %v1678
  %v1703 = vtanh.pop %v1680
  %v1704 = vtanh.pop %v1683
  %v1705 = vtanh.pop %v1685
  %v1706 = vtanh.pop %v1688
  %v1707 = vtanh.pop %v1690
  %1708 = vst [vmem:[%s9] sm:$0xff] %v1692
  %1709 = vst [vmem:[%s9 + $0x8] sm:$0xff] %v1693
  %1710 = vst [vmem:[%s9 + $0x10] sm:$0xff] %v1694
  %1711 = vst [vmem:[%s9 + $0x18] sm:$0xff] %v1695
  %1712 = vst [vmem:[%s9 + $0x20] sm:$0xff] %v1696
  %1713 = vst [vmem:[%s9 + $0x28] sm:$0xff] %v1697
  %1714 = vst [vmem:[%s9 + $0x30] sm:$0xff] %v1698
  %1715 = vst [vmem:[%s9 + $0x38] sm:$0xff] %v1699
  %1716 = vst [vmem:[%s9 + $0x40] sm:$0xff] %v1700
  %1717 = vst [vmem:[%s9 + $0x48] sm:$0xff] %v1701
  %1718 = vst [vmem:[%s9 + $0x50] sm:$0xff] %v1702
  %1719 = vst [vmem:[%s9 + $0x58] sm:$0xff] %v1703
  %1720 = vst [vmem:[%s9 + $0x60] sm:$0xff] %v1704
  %1721 = vst [vmem:[%s9 + $0x68] sm:$0xff] %v1705
  %1722 = vst [vmem:[%s9 + $0x70] sm:$0xff] %v1706
  %1723 = vst [vmem:[%s9 + $0x78] sm:$0xff] %v1707
  // Predicated region
  $region38: #{decoder_forward.1} parent=0 // pred_check
    _
  $region39: #{decoder_forward.1} parent=0 // pred_check_branch
    %1725 = sbr.rel (0) target = $region41
  $region40: #{decoder_forward.1} parent=0 // pred_region
    _
  $region41: #{decoder_forward.1} parent=0 // pred_fallthru
    _
  // Predicated region
  $region42: #{decoder_forward.1} parent=0 // pred_check
    _
  $region43: #{decoder_forward.1} parent=0 // pred_check_branch
    %1727 = sbr.rel (0) target = $region45
  $region44: #{decoder_forward.1} parent=0 // pred_region
    _
  $region45: #{decoder_forward.1} parent=0 // pred_fallthru
    _

</llo_original>
